<compile_context>
chip_gen: v7x
topology: tpu7x:2x2x1
jax: 0.10.0
libtpu: 0.0.40
codegen_flags: <defaults>
</compile_context>

<pallas_src>
import functools

import jax
import jax.numpy as jnp
from jax.experimental import pallas as pl
from jax.experimental.pallas import tpu as pltpu

HIDDEN = 768
NUM_CLASSES = 2
CLS_PAD = 128               # pad classifier output to a full lane width
VOCAB = 128
DEFAULT_BLOCK_ROWS = 256    # production row-tile size (multiple of 256 for v6e/v7x MXU)


def _round_up(x, m):
    return ((x + m - 1) // m) * m


# --------------------------------------------------------------------------
# Kernel 1: synthetic encoder layer (row-tiled over flattened tokens)
#   x:(TM, H) bf16 token embeddings, m:(TM, 1) f32 attention mask,
#   w:(H, H) bf16, b:(1, H) f32  ->  (TM, H) f32 hidden-state tile
# --------------------------------------------------------------------------
def encoder_layer_kernel(x_ref, m_ref, w_ref, b_ref, o_ref):
    # bf16 x bf16 -> f32 accumulation on the MXU.
    h = jnp.dot(x_ref[...], w_ref[...], preferred_element_type=jnp.float32)
    h = jnp.tanh(h + b_ref[...])
    o_ref[...] = h * m_ref[...]          # zero out padded positions


# --------------------------------------------------------------------------
# Kernel 2: classifier head on the CLS rows only
#   cls:(B, H) f32, w:(H, CLS_PAD) f32, b:(1, CLS_PAD) f32 -> (B, CLS_PAD) f32
# --------------------------------------------------------------------------
def cls_classifier_kernel(cls_ref, w_ref, b_ref, o_ref):
    o_ref[...] = (
        jnp.dot(cls_ref[...], w_ref[...], preferred_element_type=jnp.float32)
        + b_ref[...]
    )


@functools.partial(jax.jit, static_argnames=("block_rows",))
def cross_encode_classifier(input_ids, attention_mask, params,
                            *, block_rows=DEFAULT_BLOCK_ROWS):
    B, S = input_ids.shape
    rows = B * S

    # ---- glue: embedding lookup + flatten (plain JAX; input stage of the
    # external encoder stand-in) ----
    emb = jnp.take(params["embedding"], input_ids, axis=0)          # (B, S, H)
    x = emb.reshape(rows, HIDDEN).astype(jnp.bfloat16)
    m = attention_mask.reshape(rows, 1).astype(jnp.float32)

    # Row tiling: TM rows per grid step; pad rows so the grid divides evenly.
    tm = min(block_rows, _round_up(rows, 8))
    rows_pad = _round_up(rows, tm)
    if rows_pad != rows:
        x = jnp.pad(x, ((0, rows_pad - rows), (0, 0)))
        m = jnp.pad(m, ((0, rows_pad - rows), (0, 0)))

    w_enc = params["w_enc"].astype(jnp.bfloat16)
    b_enc = params["b_enc"].astype(jnp.float32)

    # ---- Pallas: encoder layer (MXU hot path, pipelined row tiles) ----
    hidden = pl.pallas_call(
        encoder_layer_kernel,
        out_shape=jax.ShapeDtypeStruct((rows_pad, HIDDEN), jnp.float32),
        grid=(rows_pad // tm,),
        in_specs=[
            pl.BlockSpec((tm, HIDDEN), lambda i: (i, 0)),       # activations: tiled
            pl.BlockSpec((tm, 1), lambda i: (i, 0)),            # mask: tiled
            pl.BlockSpec((HIDDEN, HIDDEN), lambda i: (0, 0)),   # weight: resident
            pl.BlockSpec((1, HIDDEN), lambda i: (0, 0)),        # bias: resident
        ],
        out_specs=pl.BlockSpec((tm, HIDDEN), lambda i: (i, 0)),
        compiler_params=pltpu.CompilerParams(
            dimension_semantics=("parallel",),   # independent tiles -> megacore on v7x
            vmem_limit_bytes=32 * 1024 * 1024,   # ~5 MiB actually used; safe on all gens
        ),
    )(x, m, w_enc, b_enc)

    # last_hidden_state[:, 0] : slice the CLS rows in the wrapper so the
    # classifier kernel never DMAs the full (B, S, H) hidden state.
    cls = hidden[:rows].reshape(B, S, HIDDEN)[:, 0, :]              # (B, H)

    # ---- Pallas: Linear(768, 2), output lanes padded to 128 ----
    logits_pad = pl.pallas_call(
        cls_classifier_kernel,
        out_shape=jax.ShapeDtypeStruct((B, CLS_PAD), jnp.float32),
        grid=(1,),
        in_specs=[
            pl.BlockSpec((B, HIDDEN), lambda i: (0, 0)),
            pl.BlockSpec((HIDDEN, CLS_PAD), lambda i: (0, 0)),
            pl.BlockSpec((1, CLS_PAD), lambda i: (0, 0)),
        ],
        out_specs=pl.BlockSpec((B, CLS_PAD), lambda i: (0, 0)),
        compiler_params=pltpu.CompilerParams(
            dimension_semantics=("arbitrary",),
            vmem_limit_bytes=32 * 1024 * 1024,
        ),
    )(cls, params["w_cls_pad"], params["b_cls_pad"])

    return logits_pad[:, :NUM_CLASSES]


def init_params(key):
    k0, k1, k2, k3 = jax.random.split(key, 4)
    w_cls = 0.02 * jax.random.normal(k2, (HIDDEN, NUM_CLASSES), jnp.float32)
    b_cls = 0.01 * jax.random.normal(k3, (1, NUM_CLASSES), jnp.float32)
    # Zero-pad the classifier to 128 output lanes (lane-dense store in-kernel).
    w_cls_pad = jnp.zeros((HIDDEN, CLS_PAD), jnp.float32).at[:, :NUM_CLASSES].set(w_cls)
    b_cls_pad = jnp.zeros((1, CLS_PAD), jnp.float32).at[:, :NUM_CLASSES].set(b_cls)
    return {
        "embedding": 0.02 * jax.random.normal(k0, (VOCAB, HIDDEN), jnp.float32),
        "w_enc": 0.02 * jax.random.normal(k1, (HIDDEN, HIDDEN), jnp.float32),
        "b_enc": jnp.zeros((1, HIDDEN), jnp.float32),
        # nn.Linear(768, 2): torch weight (2, 768); stored transposed (768, 2)
        "w_cls": w_cls,
        "b_cls": b_cls,
        "w_cls_pad": w_cls_pad,
        "b_cls_pad": b_cls_pad,
    }


def reference_forward(input_ids, attention_mask, params):
    # Plain-JAX reference with the same bf16-matmul / f32-accumulate recipe.
    emb = jnp.take(params["embedding"], input_ids, axis=0)          # (B, S, H)
    h = jnp.einsum(
        "bsh,hk->bsk",
        emb.astype(jnp.bfloat16),
        params["w_enc"].astype(jnp.bfloat16),
        preferred_element_type=jnp.float32,
    )
    h = jnp.tanh(h + params["b_enc"])
    h = h * attention_mask[..., None].astype(jnp.float32)
    cls = h[:, 0, :]
    return cls @ params["w_cls"] + params["b_cls"]


if __name__ == "__main__":
    key = jax.random.PRNGKey(0)
    pkey, ikey = jax.random.split(key)

    B, S = 2, 8
    params = init_params(pkey)
    input_ids = jax.random.randint(ikey, (B, S), 0, VOCAB, dtype=jnp.int32)
    attention_mask = jnp.ones((B, S), dtype=jnp.float32).at[1, 6:].set(0.0)

    # block_rows=8 so the toy 16-row problem still exercises the multi-tile
    # pipelined path (grid=(2,)); production default is 256.
    logits = cross_encode_classifier(input_ids, attention_mask, params, block_rows=8)
    jax.block_until_ready(logits)

    ref = reference_forward(input_ids, attention_mask, params)
    assert logits.shape == (B, NUM_CLASSES) and logits.dtype == jnp.float32
    assert jnp.allclose(logits, ref, atol=2e-3, rtol=2e-2)
    print("KERNEL_OK")
</pallas_src>

<mosaic_0001>
module attributes {stable_mosaic.version = 11 : i64} {
  func.func @encoder_layer_kernel(%arg0: i32, %arg1: memref<8x768xbf16, #tpu.memory_space<vmem>>, %arg2: memref<8x1xf32, #tpu.memory_space<vmem>>, %arg3: memref<768x768xbf16, #tpu.memory_space<vmem>>, %arg4: memref<1x768xf32, #tpu.memory_space<vmem>>, %arg5: memref<8x768xf32, #tpu.memory_space<vmem>>) attributes {dimension_semantics = [#tpu.dimension_semantics<parallel>], iteration_bounds = array<i64: 2>, scalar_prefetch = 0 : i64, scratch_operands = 0 : i64, tpu.core_type = #tpu.core_type<tc>, window_params = [{transform_indices = @transform_0, window_bounds = array<i64: 8, 768>}, {transform_indices = @transform_1, window_bounds = array<i64: 8, 1>}, {pipeline_mode = #tpu.pipeline_mode<synchronous>, transform_indices = @transform_2, window_bounds = array<i64: 768, 768>}, {pipeline_mode = #tpu.pipeline_mode<synchronous>, transform_indices = @transform_3, window_bounds = array<i64: 1, 768>}, {transform_indices = @transform_4, window_bounds = array<i64: 8, 768>}]} {
    %c0 = arith.constant 0 : index
    %c0_0 = arith.constant 0 : index
    %0 = vector.load %arg1[%c0, %c0_0] : memref<8x768xbf16, #tpu.memory_space<vmem>>, vector<8x768xbf16>
    %c0_1 = arith.constant 0 : index
    %c0_2 = arith.constant 0 : index
    %1 = vector.load %arg3[%c0_1, %c0_2] : memref<768x768xbf16, #tpu.memory_space<vmem>>, vector<768x768xbf16>
    %cst = arith.constant dense<0.000000e+00> : vector<8x768xf32>
    %2 = tpu.matmul %0, %1, %cst {dimension_numbers = #tpu.dot_dimension_numbers<[1], [0], [0], [1], [0, 0, 1, 1], [], []>} : vector<8x768xbf16>, vector<768x768xbf16>, vector<8x768xf32> -> vector<8x768xf32>
    %c0_3 = arith.constant 0 : index
    %c0_4 = arith.constant 0 : index
    %3 = vector.load %arg4[%c0_3, %c0_4] : memref<1x768xf32, #tpu.memory_space<vmem>>, vector<1x768xf32>
    %4 = vector.broadcast %3 : vector<1x768xf32> to vector<8x768xf32>
    %5 = arith.addf %2, %4 : vector<8x768xf32>
    %6 = math.tanh %5 : vector<8x768xf32>
    %c0_5 = arith.constant 0 : index
    %c0_6 = arith.constant 0 : index
    %7 = vector.load %arg2[%c0_5, %c0_6] : memref<8x1xf32, #tpu.memory_space<vmem>>, vector<8x1xf32>
    %8 = vector.broadcast %7 : vector<8x1xf32> to vector<8x768xf32>
    %9 = arith.mulf %6, %8 : vector<8x768xf32>
    %c0_7 = arith.constant 0 : index
    %c0_8 = arith.constant 0 : index
    %10 = vector.load %arg5[%c0_7, %c0_8] : memref<8x768xf32, #tpu.memory_space<vmem>>, vector<8x768xf32>
    tpu.vector_store %arg5[%c0_7, %c0_8], %9 {strides = array<i32>} : memref<8x768xf32, #tpu.memory_space<vmem>>, vector<8x768xf32>,
    return
  }
  func.func @transform_0(%arg0: i32) -> (i32, i32) {
    %c0_i32 = arith.constant 0 : i32
    %c0_i32_0 = arith.constant 0 : i32
    return %arg0, %c0_i32 : i32, i32
  }
  func.func @transform_1(%arg0: i32) -> (i32, i32) {
    %c0_i32 = arith.constant 0 : i32
    %c0_i32_0 = arith.constant 0 : i32
    return %arg0, %c0_i32 : i32, i32
  }
  func.func @transform_2(%arg0: i32) -> (i32, i32) {
    %c0_i32 = arith.constant 0 : i32
    %c0_i32_0 = arith.constant 0 : i32
    %c0_i32_1 = arith.constant 0 : i32
    return %c0_i32, %c0_i32_0 : i32, i32
  }
  func.func @transform_3(%arg0: i32) -> (i32, i32) {
    %c0_i32 = arith.constant 0 : i32
    %c0_i32_0 = arith.constant 0 : i32
    %c0_i32_1 = arith.constant 0 : i32
    return %c0_i32, %c0_i32_0 : i32, i32
  }
  func.func @transform_4(%arg0: i32) -> (i32, i32) {
    %c0_i32 = arith.constant 0 : i32
    %c0_i32_0 = arith.constant 0 : i32
    return %arg0, %c0_i32 : i32, i32
  }
}

module attributes {stable_mosaic.version = 11 : i64} {
  func.func @cls_classifier_kernel(%arg0: i32, %arg1: memref<2x768xf32, #tpu.memory_space<vmem>>, %arg2: memref<768x128xf32, #tpu.memory_space<vmem>>, %arg3: memref<1x128xf32, #tpu.memory_space<vmem>>, %arg4: memref<2x128xf32, #tpu.memory_space<vmem>>) attributes {dimension_semantics = [#tpu.dimension_semantics<arbitrary>], iteration_bounds = array<i64: 1>, scalar_prefetch = 0 : i64, scratch_operands = 0 : i64, tpu.core_type = #tpu.core_type<tc>, window_params = [{pipeline_mode = #tpu.pipeline_mode<synchronous>, transform_indices = @transform_0, window_bounds = array<i64: 2, 768>}, {pipeline_mode = #tpu.pipeline_mode<synchronous>, transform_indices = @transform_1, window_bounds = array<i64: 768, 128>}, {pipeline_mode = #tpu.pipeline_mode<synchronous>, transform_indices = @transform_2, window_bounds = array<i64: 1, 128>}, {pipeline_mode = #tpu.pipeline_mode<synchronous>, transform_indices = @transform_3, window_bounds = array<i64: 2, 128>}]} {
    %c0 = arith.constant 0 : index
    %c0_0 = arith.constant 0 : index
    %0 = vector.load %arg1[%c0, %c0_0] : memref<2x768xf32, #tpu.memory_space<vmem>>, vector<2x768xf32>
    %c0_1 = arith.constant 0 : index
    %c0_2 = arith.constant 0 : index
    %1 = vector.load %arg2[%c0_1, %c0_2] : memref<768x128xf32, #tpu.memory_space<vmem>>, vector<768x128xf32>
    %cst = arith.constant dense<0.000000e+00> : vector<2x128xf32>
    %2 = tpu.matmul %0, %1, %cst {dimension_numbers = #tpu.dot_dimension_numbers<[1], [0], [0], [1], [0, 0, 1, 1], [], []>} : vector<2x768xf32>, vector<768x128xf32>, vector<2x128xf32> -> vector<2x128xf32>
    %c0_3 = arith.constant 0 : index
    %c0_4 = arith.constant 0 : index
    %3 = vector.load %arg3[%c0_3, %c0_4] : memref<1x128xf32, #tpu.memory_space<vmem>>, vector<1x128xf32>
    %4 = vector.broadcast %3 : vector<1x128xf32> to vector<2x128xf32>
    %5 = arith.addf %2, %4 : vector<2x128xf32>
    %c0_5 = arith.constant 0 : index
    %c0_6 = arith.constant 0 : index
    %6 = vector.load %arg4[%c0_5, %c0_6] : memref<2x128xf32, #tpu.memory_space<vmem>>, vector<2x128xf32>
    tpu.vector_store %arg4[%c0_5, %c0_6], %5 {strides = array<i32>} : memref<2x128xf32, #tpu.memory_space<vmem>>, vector<2x128xf32>,
    return
  }
  func.func @transform_0(%arg0: i32) -> (i32, i32) {
    %c0_i32 = arith.constant 0 : i32
    %c0_i32_0 = arith.constant 0 : i32
    %c0_i32_1 = arith.constant 0 : i32
    return %c0_i32, %c0_i32_0 : i32, i32
  }
  func.func @transform_1(%arg0: i32) -> (i32, i32) {
    %c0_i32 = arith.constant 0 : i32
    %c0_i32_0 = arith.constant 0 : i32
    %c0_i32_1 = arith.constant 0 : i32
    return %c0_i32, %c0_i32_0 : i32, i32
  }
  func.func @transform_2(%arg0: i32) -> (i32, i32) {
    %c0_i32 = arith.constant 0 : i32
    %c0_i32_0 = arith.constant 0 : i32
    %c0_i32_1 = arith.constant 0 : i32
    return %c0_i32, %c0_i32_0 : i32, i32
  }
  func.func @transform_3(%arg0: i32) -> (i32, i32) {
    %c0_i32 = arith.constant 0 : i32
    %c0_i32_0 = arith.constant 0 : i32
    %c0_i32_1 = arith.constant 0 : i32
    return %c0_i32, %c0_i32_0 : i32, i32
  }
}

</mosaic_0001>

<llo_original>
// kernel: cross_encode_classifier.3
$region0: #{cross_encode_classifier.3}
  #allocation0 [shape = 'u32[]', space=smem, size = 0x4, offset = 0x4, fixed_abs, tag = 'smem constant byte address 0x4 - core index']
  #allocation1 [shape = 'u32[144,128]{1,0:T(1,128)}', space=vmem, size = 0x12000, scoped, tag = 'internal scratch']
  %s0 = inlined_call_operand.vmem [shape: f32[2,768], index: 0, kind: input, shape index: {}]
  %s1 = inlined_call_operand.vmem [shape: f32[768,128], index: 1, kind: input, shape index: {}]
  %s2 = inlined_call_operand.vmem [shape: f32[1,128], index: 2, kind: input, shape index: {}]
  %s3 = inlined_call_operand.hbm [shape: f32[2,128], index: 3, kind: output, shape index: {}]
  %s4 = sld [smem:[#allocation0]]
  $region22: #{cross_encode_classifier.3} parent=0
    _
  %s6 = ssub.s32 1, %s4
  %s7 = scalar_select 0, %s6, %s4
  $region1: #{cross_encode_classifier.3} parent=0
    #allocation2 [shape = 'u8[1024]{0}', space=vmem, size = 0x400, scoped, tag = 'output window, operand 0, single buffered']
    #allocation3 [shape = 's32[1]{0}', space=sflag, size = 0x4, scoped, tag = 'scoped memory for cross_encode_classifier.3']
    %8 = vsyncpa [#allocation3], 0
    // Predicated region
    $region2: #{cross_encode_classifier.3} parent=1 // pred_check
      _
    $region3: #{cross_encode_classifier.3} parent=1 // pred_check_branch
      %10 = sbr.rel (0) target = $region5
    $region4: #{cross_encode_classifier.3} parent=1 // pred_region
      _
    $region5: #{cross_encode_classifier.3} parent=1 // pred_fallthru
      _
    // Predicated region
    $region6: #{cross_encode_classifier.3} parent=1 // pred_check
      _
    $region7: #{cross_encode_classifier.3} parent=1 // pred_check_branch
      %12 = sbr.rel (0) target = $region9
    $region8: #{cross_encode_classifier.3} parent=1 // pred_region
      _
    $region9: #{cross_encode_classifier.3} parent=1 // pred_fallthru
      _
    // Predicated region
    $region10: #{cross_encode_classifier.3} parent=1 // pred_check
      _
    $region11: #{cross_encode_classifier.3} parent=1 // pred_check_branch
      %14 = sbr.rel (0) target = $region13
    $region12: #{cross_encode_classifier.3} parent=1 // pred_region
      _
    $region13: #{cross_encode_classifier.3} parent=1 // pred_fallthru
      _
    %v15 = vld [vmem:[%s0] sm:$0xff]
    %v16 = vld [vmem:[%s0 + $0x8] sm:$0xf]
    %v17 = vld [vmem:[%s1] sm:$0xff]
    %v18 = vld [vmem:[%s1 + $0x8] sm:$0xff]
    %v19 = vld [vmem:[%s1 + $0x10] sm:$0xff]
    %v20 = vld [vmem:[%s1 + $0x18] sm:$0xff]
    %v21 = vld [vmem:[%s1 + $0x20] sm:$0xff]
    %v22 = vld [vmem:[%s1 + $0x28] sm:$0xff]
    %v23 = vld [vmem:[%s1 + $0x30] sm:$0xff]
    %v24 = vld [vmem:[%s1 + $0x38] sm:$0xff]
    %v25 = vld [vmem:[%s1 + $0x40] sm:$0xff]
    %v26 = vld [vmem:[%s1 + $0x48] sm:$0xff]
    %v27 = vld [vmem:[%s1 + $0x50] sm:$0xff]
    %v28 = vld [vmem:[%s1 + $0x58] sm:$0xff]
    %v29 = vld [vmem:[%s1 + $0x60] sm:$0xff]
    %v30 = vld [vmem:[%s1 + $0x68] sm:$0xff]
    %v31 = vld [vmem:[%s1 + $0x70] sm:$0xff]
    %v32 = vld [vmem:[%s1 + $0x78] sm:$0xff]
    %v33 = vld [vmem:[%s1 + $0x80] sm:$0xff]
    %v34 = vld [vmem:[%s1 + $0x88] sm:$0xff]
    %v35 = vld [vmem:[%s1 + $0x90] sm:$0xff]
    %v36 = vld [vmem:[%s1 + $0x98] sm:$0xff]
    %v37 = vld [vmem:[%s1 + $0xa0] sm:$0xff]
    %v38 = vld [vmem:[%s1 + $0xa8] sm:$0xff]
    %v39 = vld [vmem:[%s1 + $0xb0] sm:$0xff]
    %v40 = vld [vmem:[%s1 + $0xb8] sm:$0xff]
    %v41 = vld [vmem:[%s1 + $0xc0] sm:$0xff]
    %v42 = vld [vmem:[%s1 + $0xc8] sm:$0xff]
    %v43 = vld [vmem:[%s1 + $0xd0] sm:$0xff]
    %v44 = vld [vmem:[%s1 + $0xd8] sm:$0xff]
    %v45 = vld [vmem:[%s1 + $0xe0] sm:$0xff]
    %v46 = vld [vmem:[%s1 + $0xe8] sm:$0xff]
    %v47 = vld [vmem:[%s1 + $0xf0] sm:$0xff]
    %v48 = vld [vmem:[%s1 + $0xf8] sm:$0xff]
    %v49 = vld [vmem:[%s1 + $0x100] sm:$0xff]
    %v50 = vld [vmem:[%s1 + $0x108] sm:$0xff]
    %v51 = vld [vmem:[%s1 + $0x110] sm:$0xff]
    %v52 = vld [vmem:[%s1 + $0x118] sm:$0xff]
    %v53 = vld [vmem:[%s1 + $0x120] sm:$0xff]
    %v54 = vld [vmem:[%s1 + $0x128] sm:$0xff]
    %v55 = vld [vmem:[%s1 + $0x130] sm:$0xff]
    %v56 = vld [vmem:[%s1 + $0x138] sm:$0xff]
    %v57 = vld [vmem:[%s1 + $0x140] sm:$0xff]
    %v58 = vld [vmem:[%s1 + $0x148] sm:$0xff]
    %v59 = vld [vmem:[%s1 + $0x150] sm:$0xff]
    %v60 = vld [vmem:[%s1 + $0x158] sm:$0xff]
    %v61 = vld [vmem:[%s1 + $0x160] sm:$0xff]
    %v62 = vld [vmem:[%s1 + $0x168] sm:$0xff]
    %v63 = vld [vmem:[%s1 + $0x170] sm:$0xff]
    %v64 = vld [vmem:[%s1 + $0x178] sm:$0xff]
    %v65 = vld [vmem:[%s1 + $0x180] sm:$0xff]
    %v66 = vld [vmem:[%s1 + $0x188] sm:$0xff]
    %v67 = vld [vmem:[%s1 + $0x190] sm:$0xff]
    %v68 = vld [vmem:[%s1 + $0x198] sm:$0xff]
    %v69 = vld [vmem:[%s1 + $0x1a0] sm:$0xff]
    %v70 = vld [vmem:[%s1 + $0x1a8] sm:$0xff]
    %v71 = vld [vmem:[%s1 + $0x1b0] sm:$0xff]
    %v72 = vld [vmem:[%s1 + $0x1b8] sm:$0xff]
    %v73 = vld [vmem:[%s1 + $0x1c0] sm:$0xff]
    %v74 = vld [vmem:[%s1 + $0x1c8] sm:$0xff]
    %v75 = vld [vmem:[%s1 + $0x1d0] sm:$0xff]
    %v76 = vld [vmem:[%s1 + $0x1d8] sm:$0xff]
    %v77 = vld [vmem:[%s1 + $0x1e0] sm:$0xff]
    %v78 = vld [vmem:[%s1 + $0x1e8] sm:$0xff]
    %v79 = vld [vmem:[%s1 + $0x1f0] sm:$0xff]
    %v80 = vld [vmem:[%s1 + $0x1f8] sm:$0xff]
    %v81 = vld [vmem:[%s1 + $0x200] sm:$0xff]
    %v82 = vld [vmem:[%s1 + $0x208] sm:$0xff]
    %v83 = vld [vmem:[%s1 + $0x210] sm:$0xff]
    %v84 = vld [vmem:[%s1 + $0x218] sm:$0xff]
    %v85 = vld [vmem:[%s1 + $0x220] sm:$0xff]
    %v86 = vld [vmem:[%s1 + $0x228] sm:$0xff]
    %v87 = vld [vmem:[%s1 + $0x230] sm:$0xff]
    %v88 = vld [vmem:[%s1 + $0x238] sm:$0xff]
    %v89 = vld [vmem:[%s1 + $0x240] sm:$0xff]
    %v90 = vld [vmem:[%s1 + $0x248] sm:$0xff]
    %v91 = vld [vmem:[%s1 + $0x250] sm:$0xff]
    %v92 = vld [vmem:[%s1 + $0x258] sm:$0xff]
    %v93 = vld [vmem:[%s1 + $0x260] sm:$0xff]
    %v94 = vld [vmem:[%s1 + $0x268] sm:$0xff]
    %v95 = vld [vmem:[%s1 + $0x270] sm:$0xff]
    %v96 = vld [vmem:[%s1 + $0x278] sm:$0xff]
    %v97 = vld [vmem:[%s1 + $0x280] sm:$0xff]
    %v98 = vld [vmem:[%s1 + $0x288] sm:$0xff]
    %v99 = vld [vmem:[%s1 + $0x290] sm:$0xff]
    %v100 = vld [vmem:[%s1 + $0x298] sm:$0xff]
    %v101 = vld [vmem:[%s1 + $0x2a0] sm:$0xff]
    %v102 = vld [vmem:[%s1 + $0x2a8] sm:$0xff]
    %v103 = vld [vmem:[%s1 + $0x2b0] sm:$0xff]
    %v104 = vld [vmem:[%s1 + $0x2b8] sm:$0xff]
    %v105 = vld [vmem:[%s1 + $0x2c0] sm:$0xff]
    %v106 = vld [vmem:[%s1 + $0x2c8] sm:$0xff]
    %v107 = vld [vmem:[%s1 + $0x2d0] sm:$0xff]
    %v108 = vld [vmem:[%s1 + $0x2d8] sm:$0xff]
    %v109 = vld [vmem:[%s1 + $0x2e0] sm:$0xff]
    %v110 = vld [vmem:[%s1 + $0x2e8] sm:$0xff]
    %v111 = vld [vmem:[%s1 + $0x2f0] sm:$0xff]
    %v112 = vld [vmem:[%s1 + $0x2f8] sm:$0xff]
    %v113 = vld [vmem:[%s2] sm:$0x1]
    %v115 = vlaneseq
    %v116 = vshrl.u32 %v115, 7
    %v117 = vsub.s32 0, %v116
    %v118 = vrot.slane %v113, %v117
    %v122 = vcombine.high %v15, %v15
    %v124 = vunpack.c.l.s4 1983009808
    %v125 = vunpack.c.0.s8 %v124
    %v126 = vlaneseq
    %v127 = vshrl.u32 %v126, 7
    %v128 = vsub.s32 %v125, %v127
    %v129 = vrot.slane %v15, %v128
    %v131 = vunpack.c.l.s4 1983009808
    %v132 = vunpack.c.0.s8 %v131
    %v133 = vlaneseq
    %v134 = vshrl.u32 %v133, 7
    %v135 = vsub.s32 %v132, %v134
    %v136 = vrot.slane %v122, %v135
    %v137 = vcombine.high %v129, %v129
    %v138 = vcombine.high %v136, %v136
    %v140 = vunpack.c.l.s4 1983009808
    %v141 = vunpack.c.0.s8 %v140
    %v142 = vlaneseq
    %v143 = vshrl.u32 %v142, 7
    %v144 = vsub.s32 %v141, %v143
    %v145 = vrot.slane %v16, %v144
    %v146 = vcombine.high %v145, %v145
    %153 = vmatprep.subr.mxu0 0.0
    %154 = vmatpush1.msra.mxu0 %v17
    %155 = vmatprep.subr.mxu0 0.0
    %156 = vmatpush1.msra.mxu0 %v18
    %157 = vmatprep.subr.mxu0 0.0
    %158 = vmatpush1.msra.mxu0 %v19
    %159 = vmatprep.subr.mxu0 0.0
    %160 = vmatpush1.msra.mxu0 %v20
    %161 = vmatprep.subr.mxu0 0.0
    %162 = vmatpush1.msra.mxu0 %v21
    %163 = vmatprep.subr.mxu0 0.0
    %164 = vmatpush1.msra.mxu0 %v22
    %165 = vmatprep.subr.mxu0 0.0
    %166 = vmatpush1.msra.mxu0 %v23
    %167 = vmatprep.subr.mxu0 0.0
    %168 = vmatpush1.msra.mxu0 %v24
    %169 = vmatprep.subr.mxu0 0.0
    %170 = vmatpush1.msra.mxu0 %v25
    %171 = vmatprep.subr.mxu0 0.0
    %172 = vmatpush1.msra.mxu0 %v26
    %173 = vmatprep.subr.mxu0 0.0
    %174 = vmatpush1.msra.mxu0 %v27
    %175 = vmatprep.subr.mxu0 0.0
    %176 = vmatpush1.msra.mxu0 %v28
    %177 = vmatprep.subr.mxu0 0.0
    %178 = vmatpush1.msra.mxu0 %v29
    %179 = vmatprep.subr.mxu0 0.0
    %180 = vmatpush1.msra.mxu0 %v30
    %181 = vmatprep.subr.mxu0 0.0
    %182 = vmatpush1.msra.mxu0 %v31
    %183 = vmatprep.subr.mxu0 0.0
    %184 = vmatpush1.msra.mxu0 %v32
    %185 = vmatprep.subr.mxu0 0.0
    %186 = vmatpush1.msra.mxu0 %v33
    %187 = vmatprep.subr.mxu0 0.0
    %188 = vmatpush1.msra.mxu0 %v34
    %189 = vmatprep.subr.mxu0 0.0
    %190 = vmatpush1.msra.mxu0 %v35
    %191 = vmatprep.subr.mxu0 0.0
    %192 = vmatpush1.msra.mxu0 %v36
    %193 = vmatprep.subr.mxu0 0.0
    %194 = vmatpush1.msra.mxu0 %v37
    %195 = vmatprep.subr.mxu0 0.0
    %196 = vmatpush1.msra.mxu0 %v38
    %197 = vmatprep.subr.mxu0 0.0
    %198 = vmatpush1.msra.mxu0 %v39
    %199 = vmatprep.subr.mxu0 0.0
    %200 = vmatpush1.msra.mxu0 %v40
    %201 = vmatprep.subr.mxu0 0.0
    %202 = vmatpush1.msra.mxu0 %v41
    %203 = vmatprep.subr.mxu0 0.0
    %204 = vmatpush1.msra.mxu0 %v42
    %205 = vmatprep.subr.mxu0 0.0
    %206 = vmatpush1.msra.mxu0 %v43
    %207 = vmatprep.subr.mxu0 0.0
    %208 = vmatpush1.msra.mxu0 %v44
    %209 = vmatprep.subr.mxu0 0.0
    %210 = vmatpush1.msra.mxu0 %v45
    %211 = vmatprep.subr.mxu0 0.0
    %212 = vmatpush1.msra.mxu0 %v46
    %213 = vmatprep.subr.mxu0 0.0
    %214 = vmatpush1.msra.mxu0 %v47
    %215 = vmatprep.subr.mxu0 0.0
    %216 = vmatpush1.msra.mxu0 %v48
    %217 = vmatprep.mubr.f32.mxu0 %v137
    %218 = vmatmul.mubr.f32.gmra.mrb[0].mxu0 %v129
    %v219 = vpop.f32.mrb[0].mxu0
    %v220 = vadd.f32 %v118, %v219
    %v221 = vpop.f32.mrb[0].mxu0
    %222 = vdwg.mxu0
    %223 = vmatprep.subr.mxu0 0.0
    %224 = vmatpush1.msra.mxu0 %v49
    %225 = vmatprep.subr.mxu0 0.0
    %226 = vmatpush1.msra.mxu0 %v50
    %227 = vmatprep.subr.mxu0 0.0
    %228 = vmatpush1.msra.mxu0 %v51
    %229 = vmatprep.subr.mxu0 0.0
    %230 = vmatpush1.msra.mxu0 %v52
    %231 = vmatprep.subr.mxu0 0.0
    %232 = vmatpush1.msra.mxu0 %v53
    %233 = vmatprep.subr.mxu0 0.0
    %234 = vmatpush1.msra.mxu0 %v54
    %235 = vmatprep.subr.mxu0 0.0
    %236 = vmatpush1.msra.mxu0 %v55
    %237 = vmatprep.subr.mxu0 0.0
    %238 = vmatpush1.msra.mxu0 %v56
    %239 = vmatprep.subr.mxu0 0.0
    %240 = vmatpush1.msra.mxu0 %v57
    %241 = vmatprep.subr.mxu0 0.0
    %242 = vmatpush1.msra.mxu0 %v58
    %243 = vmatprep.subr.mxu0 0.0
    %244 = vmatpush1.msra.mxu0 %v59
    %245 = vmatprep.subr.mxu0 0.0
    %246 = vmatpush1.msra.mxu0 %v60
    %247 = vmatprep.subr.mxu0 0.0
    %248 = vmatpush1.msra.mxu0 %v61
    %249 = vmatprep.subr.mxu0 0.0
    %250 = vmatpush1.msra.mxu0 %v62
    %251 = vmatprep.subr.mxu0 0.0
    %252 = vmatpush1.msra.mxu0 %v63
    %253 = vmatprep.subr.mxu0 0.0
    %254 = vmatpush1.msra.mxu0 %v64
    %255 = vmatprep.subr.mxu0 0.0
    %256 = vmatpush1.msra.mxu0 %v65
    %257 = vmatprep.subr.mxu0 0.0
    %258 = vmatpush1.msra.mxu0 %v66
    %259 = vmatprep.subr.mxu0 0.0
    %260 = vmatpush1.msra.mxu0 %v67
    %261 = vmatprep.subr.mxu0 0.0
    %262 = vmatpush1.msra.mxu0 %v68
    %263 = vmatprep.subr.mxu0 0.0
    %264 = vmatpush1.msra.mxu0 %v69
    %265 = vmatprep.subr.mxu0 0.0
    %266 = vmatpush1.msra.mxu0 %v70
    %267 = vmatprep.subr.mxu0 0.0
    %268 = vmatpush1.msra.mxu0 %v71
    %269 = vmatprep.subr.mxu0 0.0
    %270 = vmatpush1.msra.mxu0 %v72
    %271 = vmatprep.subr.mxu0 0.0
    %272 = vmatpush1.msra.mxu0 %v73
    %273 = vmatprep.subr.mxu0 0.0
    %274 = vmatpush1.msra.mxu0 %v74
    %275 = vmatprep.subr.mxu0 0.0
    %276 = vmatpush1.msra.mxu0 %v75
    %277 = vmatprep.subr.mxu0 0.0
    %278 = vmatpush1.msra.mxu0 %v76
    %279 = vmatprep.subr.mxu0 0.0
    %280 = vmatpush1.msra.mxu0 %v77
    %281 = vmatprep.subr.mxu0 0.0
    %282 = vmatpush1.msra.mxu0 %v78
    %283 = vmatprep.subr.mxu0 0.0
    %284 = vmatpush1.msra.mxu0 %v79
    %285 = vmatprep.subr.mxu0 0.0
    %286 = vmatpush1.msra.mxu0 %v80
    %287 = vmatprep.mubr.f32.mxu0 %v138
    %288 = vmatmul.mubr.f32.gmra.mrb[0].mxu0 %v136
    %v289 = vpop.f32.mrb[0].mxu0
    %v290 = vadd.f32 %v220, %v289
    %v291 = vpop.f32.mrb[0].mxu0
    %292 = vdwg.mxu0
    %293 = vmatprep.subr.mxu0 0.0
    %294 = vmatpush1.msra.mxu0 %v81
    %295 = vmatprep.subr.mxu0 0.0
    %296 = vmatpush1.msra.mxu0 %v82
    %297 = vmatprep.subr.mxu0 0.0
    %298 = vmatpush1.msra.mxu0 %v83
    %299 = vmatprep.subr.mxu0 0.0
    %300 = vmatpush1.msra.mxu0 %v84
    %301 = vmatprep.subr.mxu0 0.0
    %302 = vmatpush1.msra.mxu0 %v85
    %303 = vmatprep.subr.mxu0 0.0
    %304 = vmatpush1.msra.mxu0 %v86
    %305 = vmatprep.subr.mxu0 0.0
    %306 = vmatpush1.msra.mxu0 %v87
    %307 = vmatprep.subr.mxu0 0.0
    %308 = vmatpush1.msra.mxu0 %v88
    %309 = vmatprep.subr.mxu0 0.0
    %310 = vmatpush1.msra.mxu0 %v89
    %311 = vmatprep.subr.mxu0 0.0
    %312 = vmatpush1.msra.mxu0 %v90
    %313 = vmatprep.subr.mxu0 0.0
    %314 = vmatpush1.msra.mxu0 %v91
    %315 = vmatprep.subr.mxu0 0.0
    %316 = vmatpush1.msra.mxu0 %v92
    %317 = vmatprep.subr.mxu0 0.0
    %318 = vmatpush1.msra.mxu0 %v93
    %319 = vmatprep.subr.mxu0 0.0
    %320 = vmatpush1.msra.mxu0 %v94
    %321 = vmatprep.subr.mxu0 0.0
    %322 = vmatpush1.msra.mxu0 %v95
    %323 = vmatprep.subr.mxu0 0.0
    %324 = vmatpush1.msra.mxu0 %v96
    %325 = vmatprep.subr.mxu0 0.0
    %326 = vmatpush1.msra.mxu0 %v97
    %327 = vmatprep.subr.mxu0 0.0
    %328 = vmatpush1.msra.mxu0 %v98
    %329 = vmatprep.subr.mxu0 0.0
    %330 = vmatpush1.msra.mxu0 %v99
    %331 = vmatprep.subr.mxu0 0.0
    %332 = vmatpush1.msra.mxu0 %v100
    %333 = vmatprep.subr.mxu0 0.0
    %334 = vmatpush1.msra.mxu0 %v101
    %335 = vmatprep.subr.mxu0 0.0
    %336 = vmatpush1.msra.mxu0 %v102
    %337 = vmatprep.subr.mxu0 0.0
    %338 = vmatpush1.msra.mxu0 %v103
    %339 = vmatprep.subr.mxu0 0.0
    %340 = vmatpush1.msra.mxu0 %v104
    %341 = vmatprep.subr.mxu0 0.0
    %342 = vmatpush1.msra.mxu0 %v105
    %343 = vmatprep.subr.mxu0 0.0
    %344 = vmatpush1.msra.mxu0 %v106
    %345 = vmatprep.subr.mxu0 0.0
    %346 = vmatpush1.msra.mxu0 %v107
    %347 = vmatprep.subr.mxu0 0.0
    %348 = vmatpush1.msra.mxu0 %v108
    %349 = vmatprep.subr.mxu0 0.0
    %350 = vmatpush1.msra.mxu0 %v109
    %351 = vmatprep.subr.mxu0 0.0
    %352 = vmatpush1.msra.mxu0 %v110
    %353 = vmatprep.subr.mxu0 0.0
    %354 = vmatpush1.msra.mxu0 %v111
    %355 = vmatprep.subr.mxu0 0.0
    %356 = vmatpush1.msra.mxu0 %v112
    %357 = vmatprep.mubr.f32.mxu0 %v146
    %358 = vmatmul.mubr.f32.gmra.mrb[0].mxu0 %v145
    %v359 = vpop.f32.mrb[0].mxu0
    %v360 = vadd.f32 %v290, %v359
    %v361 = vpop.f32.mrb[0].mxu0
    %362 = vdwg.mxu0
    %363 = vst [vmem:[#allocation2] sm:$0x3] %v360
    // Predicated region
    $region14: #{cross_encode_classifier.3} parent=1 // pred_check
      _
    $region15: #{cross_encode_classifier.3} parent=1 // pred_check_branch
      %365 = sbr.rel (0) target = $region17
    $region16: #{cross_encode_classifier.3} parent=1 // pred_region
      %s367 = ssub.s32 32, 32
      %368 = vsyncadd [#allocation3], %s367
      %s370 = sshll.u32 [#allocation2], 4
      %s371 = int_to_ptr.vmem [resolvable:$true] %s370
      %373 = dma.vmem_to_hbm [thread:$0]  %s371, 32, %s3, [#allocation3]
    $region17: #{cross_encode_classifier.3} parent=1 // pred_fallthru
      _
    // Predicated region
    $region18: #{cross_encode_classifier.3} parent=1 // pred_check
      _
    $region19: #{cross_encode_classifier.3} parent=1 // pred_check_branch
      %375 = sbr.rel (0) target = $region21
    $region20: #{cross_encode_classifier.3} parent=1 // pred_region
      %376 = dma.done [#allocation3], 32
    $region21: #{cross_encode_classifier.3} parent=1 // pred_fallthru
      _
    %377 = vsyncpa [#allocation3], 1

// kernel: cross_encode_classifier.2
$region0: #{cross_encode_classifier.2}
  #allocation0 [shape = 'u32[]', space=smem, size = 0x4, offset = 0x4, fixed_abs, tag = 'smem constant byte address 0x4 - core index']
  #allocation1 [shape = 'u32[144,128]{1,0:T(1,128)}', space=vmem, size = 0x12000, scoped, tag = 'internal scratch']
  %s0 = inlined_call_operand.vmem [shape: bf16[16,768], index: 0, kind: input, shape index: {}]
  %s1 = inlined_call_operand.vmem [shape: f32[16,1], index: 1, kind: input, shape index: {}]
  %s2 = inlined_call_operand.vmem [shape: bf16[768,768], index: 2, kind: input, shape index: {}]
  %s3 = inlined_call_operand.vmem [shape: f32[1,768], index: 3, kind: input, shape index: {}]
  %s4 = inlined_call_operand.vmem [shape: f32[16,768], index: 4, kind: output, shape index: {}]
  %s5 = sld [smem:[#allocation0]]
  $region49: #{cross_encode_classifier.2} parent=0
    _
  %s7 = ssub.s32 1, %s5
  %s8 = scalar_select 0, %s7, %s5
  loop: start=0, step=1, limit=4
  $region2: #{cross_encode_classifier.2} parent=0 // loop_pre_header
    _
  $region3: #{cross_encode_classifier.2} parent=0 // loop_header
    %s10 = sphi 0, %s14
    %p11 = scmp.ge.s32.totalorder %s10, 4
    %s20 = sphi 0, %s22
    %s23 = sphi 0, %s20
    %s24 = sphi 0, %s23
    %s40 = sphi 0, %s24
    %s46 = sphi 0, %s48
    %s49 = sphi 0, %s46
    %s50 = sphi 0, %s49
    %s66 = sphi 0, %s50
    %s70 = sphi 0, %s70
    %s72 = sphi 0, %s70
    %s73 = sphi 0, %s72
    %s87 = sphi 0, %s73
    %s91 = sphi 0, %s91
    %s93 = sphi 0, %s91
    %s94 = sphi 0, %s93
    %s108 = sphi 0, %s94
    %s114 = sphi 0, %s116
    %s117 = sphi 0, %s114
    %s118 = sphi 0, %s117
    %s134 = sphi 0, %s118
  $region4: #{cross_encode_classifier.2} parent=0 // loop_header_branch
    %13 = sbr.rel (%p11) target = $region8
  $region5: #{cross_encode_classifier.2} parent=0 // loop_body
    %s15 = ssub.s32 %s10, 1
    %s16 = ssub.s32 %s10, 2
    %s17 = sadd.s32 %s10, 1
    %s18 = ssub.s32 %s10, %s17
    %p19 = scmp.eq.s32.totalorder %s18, 0
    %s21 = sadd.s32 %s20, 1
    %s22 = scalar_select %p19, %s20, %s21
    %p25 = pneg %p19
    %p26 = scmp.eq.s32.totalorder %s10, 1
    %p27 = por %p25, %p26
    %p28 = scmp.ne.s32.totalorder %s20, %s23
    %p29 = scmp.eq.s32.totalorder %s10, 0
    %p30 = por %p28, %p29
    %p31 = scmp.ne.s32.totalorder %s20, %s23
    %p32 = scmp.eq.s32.totalorder %s15, 1
    %p33 = por %p31, %p32
    %p34 = scmp.ne.s32.totalorder %s23, %s24
    %p35 = scmp.eq.s32.totalorder %s15, 0
    %p36 = por %p34, %p35
    %p37 = scmp.ne.s32.totalorder %s23, %s24
    %p38 = scmp.eq.s32.totalorder %s16, 1
    %p39 = por %p37, %p38
    %p41 = scmp.ne.s32.totalorder %s24, %s40
    %p42 = scmp.eq.s32.totalorder %s16, 0
    %p43 = por %p41, %p42
    %s44 = ssub.s32 %s10, %s17
    %p45 = scmp.eq.s32.totalorder %s44, 0
    %s47 = sadd.s32 %s46, 1
    %s48 = scalar_select %p45, %s46, %s47
    %p51 = pneg %p45
    %p52 = scmp.eq.s32.totalorder %s10, 1
    %p53 = por %p51, %p52
    %p54 = scmp.ne.s32.totalorder %s46, %s49
    %p55 = scmp.eq.s32.totalorder %s10, 0
    %p56 = por %p54, %p55
    %p57 = scmp.ne.s32.totalorder %s46, %s49
    %p58 = scmp.eq.s32.totalorder %s15, 1
    %p59 = por %p57, %p58
    %p60 = scmp.ne.s32.totalorder %s49, %s50
    %p61 = scmp.eq.s32.totalorder %s15, 0
    %p62 = por %p60, %p61
    %p63 = scmp.ne.s32.totalorder %s49, %s50
    %p64 = scmp.eq.s32.totalorder %s16, 1
    %p65 = por %p63, %p64
    %p67 = scmp.ne.s32.totalorder %s50, %s66
    %p68 = scmp.eq.s32.totalorder %s16, 0
    %p69 = por %p67, %p68
    %s71 = sadd.s32 %s70, 1
    %p74 = scmp.eq.s32.totalorder %s10, 1
    %p75 = scmp.ne.s32.totalorder %s70, %s72
    %p76 = scmp.eq.s32.totalorder %s10, 0
    %p77 = por %p75, %p76
    %p78 = scmp.ne.s32.totalorder %s70, %s72
    %p79 = scmp.eq.s32.totalorder %s15, 1
    %p80 = por %p78, %p79
    %p81 = scmp.ne.s32.totalorder %s72, %s73
    %p82 = scmp.eq.s32.totalorder %s15, 0
    %p83 = por %p81, %p82
    %p84 = scmp.ne.s32.totalorder %s72, %s73
    %p85 = scmp.eq.s32.totalorder %s16, 1
    %p86 = por %p84, %p85
    %p88 = scmp.ne.s32.totalorder %s73, %s87
    %p89 = scmp.eq.s32.totalorder %s16, 0
    %p90 = por %p88, %p89
    %s92 = sadd.s32 %s91, 1
    %p95 = scmp.eq.s32.totalorder %s10, 1
    %p96 = scmp.ne.s32.totalorder %s91, %s93
    %p97 = scmp.eq.s32.totalorder %s10, 0
    %p98 = por %p96, %p97
    %p99 = scmp.ne.s32.totalorder %s91, %s93
    %p100 = scmp.eq.s32.totalorder %s15, 1
    %p101 = por %p99, %p100
    %p102 = scmp.ne.s32.totalorder %s93, %s94
    %p103 = scmp.eq.s32.totalorder %s15, 0
    %p104 = por %p102, %p103
    %p105 = scmp.ne.s32.totalorder %s93, %s94
    %p106 = scmp.eq.s32.totalorder %s16, 1
    %p107 = por %p105, %p106
    %p109 = scmp.ne.s32.totalorder %s94, %s108
    %p110 = scmp.eq.s32.totalorder %s16, 0
    %p111 = por %p109, %p110
    %s112 = ssub.s32 %s10, %s17
    %p113 = scmp.eq.s32.totalorder %s112, 0
    %s115 = sadd.s32 %s114, 1
    %s116 = scalar_select %p113, %s114, %s115
    %p119 = pneg %p113
    %p120 = scmp.eq.s32.totalorder %s10, 1
    %p121 = por %p119, %p120
    %p122 = scmp.ne.s32.totalorder %s114, %s117
    %p123 = scmp.eq.s32.totalorder %s10, 0
    %p124 = por %p122, %p123
    %p125 = scmp.ne.s32.totalorder %s114, %s117
    %p126 = scmp.eq.s32.totalorder %s15, 1
    %p127 = por %p125, %p126
    %p128 = scmp.ne.s32.totalorder %s117, %s118
    %p129 = scmp.eq.s32.totalorder %s15, 0
    %p130 = por %p128, %p129
    %p131 = scmp.ne.s32.totalorder %s117, %s118
    %p132 = scmp.eq.s32.totalorder %s16, 1
    %p133 = por %p131, %p132
    %p135 = scmp.ne.s32.totalorder %s118, %s134
    %p136 = scmp.eq.s32.totalorder %s16, 0
    %p137 = por %p135, %p136
    %p138 = scmp.le.s32.totalorder 1, %s10
    %p139 = scmp.lt.s32.totalorder %s10, 3
    %p140 = pnand %p138, %p139
    %p141 = pneg %p140
    // Predicated region
    $region9: #{cross_encode_classifier.2} parent=5 // pred_check
      _
    $region10: #{cross_encode_classifier.2} parent=5 // pred_check_branch
      %143 = sbr.rel (%p140) target = $region12
    $region11: #{cross_encode_classifier.2} parent=5 // pred_region
      %s144 = ssub.s32 %s10, 1
      // Predicated region
      $region13: #{cross_encode_classifier.2} parent=11 // pred_check
        %p145 = pneg %p83
      $region14: #{cross_encode_classifier.2} parent=11 // pred_check_branch
        %147 = sbr.rel (%p145) target = $region16
      $region15: #{cross_encode_classifier.2} parent=11 // pred_region
        _
      $region16: #{cross_encode_classifier.2} parent=11 // pred_fallthru
        _
      // Predicated region
      $region17: #{cross_encode_classifier.2} parent=11 // pred_check
        %p148 = pneg %p104
      $region18: #{cross_encode_classifier.2} parent=11 // pred_check_branch
        %150 = sbr.rel (%p148) target = $region20
      $region19: #{cross_encode_classifier.2} parent=11 // pred_region
        _
      $region20: #{cross_encode_classifier.2} parent=11 // pred_fallthru
        _
    $region12: #{cross_encode_classifier.2} parent=5 // pred_fallthru
      _
    %p151 = scmp.lt.s32.totalorder %s10, 2
    // Predicated region
    $region21: #{cross_encode_classifier.2} parent=5 // pred_check
      %p152 = pneg %p151
    $region22: #{cross_encode_classifier.2} parent=5 // pred_check_branch
      %154 = sbr.rel (%p152) target = $region24
    $region23: #{cross_encode_classifier.2} parent=5 // pred_region
      // Predicated region
      $region25: #{cross_encode_classifier.2} parent=23 // pred_check
        %p155 = pneg %p30
      $region26: #{cross_encode_classifier.2} parent=23 // pred_check_branch
        %157 = sbr.rel (%p155) target = $region28
      $region27: #{cross_encode_classifier.2} parent=23 // pred_region
        %p158 = scmp.lt.s32.totalorder %s10, 1
        %s159 = scalar_select %p158, %s10, 1
        %s160 = smul.addr %s159, 6
        %s161 = smul.addr %s160, 4
        %s162 = scalar_lea.vmem %s0, %s161
      $region28: #{cross_encode_classifier.2} parent=23 // pred_fallthru
        _
      // Predicated region
      $region29: #{cross_encode_classifier.2} parent=23 // pred_check
        %p163 = pneg %p56
      $region30: #{cross_encode_classifier.2} parent=23 // pred_check_branch
        %165 = sbr.rel (%p163) target = $region32
      $region31: #{cross_encode_classifier.2} parent=23 // pred_region
        %p166 = scmp.lt.s32.totalorder %s10, 1
        %s167 = scalar_select %p166, %s10, 1
        %s168 = smul.addr %s167, 8
        %s169 = scalar_lea.vmem %s1, %s168
      $region32: #{cross_encode_classifier.2} parent=23 // pred_fallthru
        _
    $region24: #{cross_encode_classifier.2} parent=5 // pred_fallthru
      _
    %p170 = scmp.le.s32.totalorder 1, %s10
    %p171 = scmp.lt.s32.totalorder %s10, 3
    %p172 = pnand %p170, %p171
    %p173 = pneg %p172
    // Predicated region
    $region33: #{cross_encode_classifier.2} parent=5 // pred_check
      _
    $region34: #{cross_encode_classifier.2} parent=5 // pred_check_branch
      %175 = sbr.rel (%p172) target = $region36
    $region35: #{cross_encode_classifier.2} parent=5 // pred_region
      %s176 = ssub.s32 %s10, 1
      %p177 = scmp.lt.s32.totalorder %s15, 1
      %s178 = scalar_select %p177, %s15, 1
      %s179 = smul.addr %s178, 6
      %s180 = smul.addr %s179, 4
      %s181 = scalar_lea.vmem %s0, %s180
      %p182 = pneg %p36
      %p183 = pneg %p33
      %p184 = scmp.lt.s32.totalorder %s15, 1
      %s185 = scalar_select %p184, %s15, 1
      %s186 = smul.addr %s185, 8
      %s187 = scalar_lea.vmem %s1, %s186
      %p188 = pneg %p62
      %p189 = pneg %p59
      %p190 = pneg %p83
      %p191 = pneg %p80
      %p192 = pneg %p104
      %p193 = pneg %p101
      %p194 = pneg %p130
      %p195 = pneg %p127
      %p196 = scmp.lt.s32.totalorder %s15, 1
      %s197 = scalar_select %p196, %s15, 1
      %s198 = smul.addr %s197, 6
      %s199 = smul.addr %s198, 8
      %s200 = scalar_lea.vmem %s4, %s199
      %p201 = scmp.lt.s32.totalorder %s15, 1
      %s202 = scalar_select %p201, %s15, 1
      %s203 = smul.addr %s202, 6
      %s204 = smul.addr %s203, 4
      %s205 = scalar_lea.vmem %s0, %s204
      %p206 = scmp.lt.s32.totalorder %s15, 1
      %s207 = scalar_select %p206, %s15, 1
      %s208 = smul.addr %s207, 8
      %s209 = scalar_lea.vmem %s1, %s208
      %p210 = scmp.lt.s32.totalorder %s15, 1
      %s211 = scalar_select %p210, %s15, 1
      %s212 = smul.addr %s211, 6
      %s213 = smul.addr %s212, 8
      %s214 = scalar_lea.vmem %s4, %s213
      %v215 = vld [vmem:[%s205] sm:$0xff]
      %v216 = vld [vmem:[%s205 + $0x8] sm:$0xff]
      %v217 = vld [vmem:[%s205 + $0x10] sm:$0xff]
      %v218 = vld [vmem:[%s2] sm:$0xff]
      %v219 = vld [vmem:[%s2 + $0x8] sm:$0xff]
      %v220 = vld [vmem:[%s2 + $0x10] sm:$0xff]
      %v221 = vld [vmem:[%s2 + $0x18] sm:$0xff]
      %v222 = vld [vmem:[%s2 + $0x20] sm:$0xff]
      %v223 = vld [vmem:[%s2 + $0x28] sm:$0xff]
      %v224 = vld [vmem:[%s2 + $0x30] sm:$0xff]
      %v225 = vld [vmem:[%s2 + $0x38] sm:$0xff]
      %v226 = vld [vmem:[%s2 + $0x40] sm:$0xff]
      %v227 = vld [vmem:[%s2 + $0x48] sm:$0xff]
      %v228 = vld [vmem:[%s2 + $0x50] sm:$0xff]
      %v229 = vld [vmem:[%s2 + $0x58] sm:$0xff]
      %v230 = vld [vmem:[%s2 + $0x60] sm:$0xff]
      %v231 = vld [vmem:[%s2 + $0x68] sm:$0xff]
      %v232 = vld [vmem:[%s2 + $0x70] sm:$0xff]
      %v233 = vld [vmem:[%s2 + $0x78] sm:$0xff]
      %v234 = vld [vmem:[%s2 + $0x80] sm:$0xff]
      %v235 = vld [vmem:[%s2 + $0x88] sm:$0xff]
      %v236 = vld [vmem:[%s2 + $0x90] sm:$0xff]
      %v237 = vld [vmem:[%s2 + $0x98] sm:$0xff]
      %v238 = vld [vmem:[%s2 + $0xa0] sm:$0xff]
      %v239 = vld [vmem:[%s2 + $0xa8] sm:$0xff]
      %v240 = vld [vmem:[%s2 + $0xb0] sm:$0xff]
      %v241 = vld [vmem:[%s2 + $0xb8] sm:$0xff]
      %v242 = vld [vmem:[%s2 + $0xc0] sm:$0xff]
      %v243 = vld [vmem:[%s2 + $0xc8] sm:$0xff]
      %v244 = vld [vmem:[%s2 + $0xd0] sm:$0xff]
      %v245 = vld [vmem:[%s2 + $0xd8] sm:$0xff]
      %v246 = vld [vmem:[%s2 + $0xe0] sm:$0xff]
      %v247 = vld [vmem:[%s2 + $0xe8] sm:$0xff]
      %v248 = vld [vmem:[%s2 + $0xf0] sm:$0xff]
      %v249 = vld [vmem:[%s2 + $0xf8] sm:$0xff]
      %v250 = vld [vmem:[%s2 + $0x100] sm:$0xff]
      %v251 = vld [vmem:[%s2 + $0x108] sm:$0xff]
      %v252 = vld [vmem:[%s2 + $0x110] sm:$0xff]
      %v253 = vld [vmem:[%s2 + $0x118] sm:$0xff]
      %v254 = vld [vmem:[%s2 + $0x120] sm:$0xff]
      %v255 = vld [vmem:[%s2 + $0x128] sm:$0xff]
      %v256 = vld [vmem:[%s2 + $0x130] sm:$0xff]
      %v257 = vld [vmem:[%s2 + $0x138] sm:$0xff]
      %v258 = vld [vmem:[%s2 + $0x140] sm:$0xff]
      %v259 = vld [vmem:[%s2 + $0x148] sm:$0xff]
      %v260 = vld [vmem:[%s2 + $0x150] sm:$0xff]
      %v261 = vld [vmem:[%s2 + $0x158] sm:$0xff]
      %v262 = vld [vmem:[%s2 + $0x160] sm:$0xff]
      %v263 = vld [vmem:[%s2 + $0x168] sm:$0xff]
      %v264 = vld [vmem:[%s2 + $0x170] sm:$0xff]
      %v265 = vld [vmem:[%s2 + $0x178] sm:$0xff]
      %v266 = vld [vmem:[%s2 + $0x180] sm:$0xff]
      %v267 = vld [vmem:[%s2 + $0x188] sm:$0xff]
      %v268 = vld [vmem:[%s2 + $0x190] sm:$0xff]
      %v269 = vld [vmem:[%s2 + $0x198] sm:$0xff]
      %v270 = vld [vmem:[%s2 + $0x1a0] sm:$0xff]
      %v271 = vld [vmem:[%s2 + $0x1a8] sm:$0xff]
      %v272 = vld [vmem:[%s2 + $0x1b0] sm:$0xff]
      %v273 = vld [vmem:[%s2 + $0x1b8] sm:$0xff]
      %v274 = vld [vmem:[%s2 + $0x1c0] sm:$0xff]
      %v275 = vld [vmem:[%s2 + $0x1c8] sm:$0xff]
      %v276 = vld [vmem:[%s2 + $0x1d0] sm:$0xff]
      %v277 = vld [vmem:[%s2 + $0x1d8] sm:$0xff]
      %v278 = vld [vmem:[%s2 + $0x1e0] sm:$0xff]
      %v279 = vld [vmem:[%s2 + $0x1e8] sm:$0xff]
      %v280 = vld [vmem:[%s2 + $0x1f0] sm:$0xff]
      %v281 = vld [vmem:[%s2 + $0x1f8] sm:$0xff]
      %v282 = vld [vmem:[%s2 + $0x200] sm:$0xff]
      %v283 = vld [vmem:[%s2 + $0x208] sm:$0xff]
      %v284 = vld [vmem:[%s2 + $0x210] sm:$0xff]
      %v285 = vld [vmem:[%s2 + $0x218] sm:$0xff]
      %v286 = vld [vmem:[%s2 + $0x220] sm:$0xff]
      %v287 = vld [vmem:[%s2 + $0x228] sm:$0xff]
      %v288 = vld [vmem:[%s2 + $0x230] sm:$0xff]
      %v289 = vld [vmem:[%s2 + $0x238] sm:$0xff]
      %v290 = vld [vmem:[%s2 + $0x240] sm:$0xff]
      %v291 = vld [vmem:[%s2 + $0x248] sm:$0xff]
      %v292 = vld [vmem:[%s2 + $0x250] sm:$0xff]
      %v293 = vld [vmem:[%s2 + $0x258] sm:$0xff]
      %v294 = vld [vmem:[%s2 + $0x260] sm:$0xff]
      %v295 = vld [vmem:[%s2 + $0x268] sm:$0xff]
      %v296 = vld [vmem:[%s2 + $0x270] sm:$0xff]
      %v297 = vld [vmem:[%s2 + $0x278] sm:$0xff]
      %v298 = vld [vmem:[%s2 + $0x280] sm:$0xff]
      %v299 = vld [vmem:[%s2 + $0x288] sm:$0xff]
      %v300 = vld [vmem:[%s2 + $0x290] sm:$0xff]
      %v301 = vld [vmem:[%s2 + $0x298] sm:$0xff]
      %v302 = vld [vmem:[%s2 + $0x2a0] sm:$0xff]
      %v303 = vld [vmem:[%s2 + $0x2a8] sm:$0xff]
      %v304 = vld [vmem:[%s2 + $0x2b0] sm:$0xff]
      %v305 = vld [vmem:[%s2 + $0x2b8] sm:$0xff]
      %v306 = vld [vmem:[%s2 + $0x2c0] sm:$0xff]
      %v307 = vld [vmem:[%s2 + $0x2c8] sm:$0xff]
      %v308 = vld [vmem:[%s2 + $0x2d0] sm:$0xff]
      %v309 = vld [vmem:[%s2 + $0x2d8] sm:$0xff]
      %v310 = vld [vmem:[%s2 + $0x2e0] sm:$0xff]
      %v311 = vld [vmem:[%s2 + $0x2e8] sm:$0xff]
      %v312 = vld [vmem:[%s2 + $0x2f0] sm:$0xff]
      %v313 = vld [vmem:[%s2 + $0x2f8] sm:$0xff]
      %v314 = vld [vmem:[%s2 + $0x300] sm:$0xff]
      %v315 = vld [vmem:[%s2 + $0x308] sm:$0xff]
      %v316 = vld [vmem:[%s2 + $0x310] sm:$0xff]
      %v317 = vld [vmem:[%s2 + $0x318] sm:$0xff]
      %v318 = vld [vmem:[%s2 + $0x320] sm:$0xff]
      %v319 = vld [vmem:[%s2 + $0x328] sm:$0xff]
      %v320 = vld [vmem:[%s2 + $0x330] sm:$0xff]
      %v321 = vld [vmem:[%s2 + $0x338] sm:$0xff]
      %v322 = vld [vmem:[%s2 + $0x340] sm:$0xff]
      %v323 = vld [vmem:[%s2 + $0x348] sm:$0xff]
      %v324 = vld [vmem:[%s2 + $0x350] sm:$0xff]
      %v325 = vld [vmem:[%s2 + $0x358] sm:$0xff]
      %v326 = vld [vmem:[%s2 + $0x360] sm:$0xff]
      %v327 = vld [vmem:[%s2 + $0x368] sm:$0xff]
      %v328 = vld [vmem:[%s2 + $0x370] sm:$0xff]
      %v329 = vld [vmem:[%s2 + $0x378] sm:$0xff]
      %v330 = vld [vmem:[%s2 + $0x380] sm:$0xff]
      %v331 = vld [vmem:[%s2 + $0x388] sm:$0xff]
      %v332 = vld [vmem:[%s2 + $0x390] sm:$0xff]
      %v333 = vld [vmem:[%s2 + $0x398] sm:$0xff]
      %v334 = vld [vmem:[%s2 + $0x3a0] sm:$0xff]
      %v335 = vld [vmem:[%s2 + $0x3a8] sm:$0xff]
      %v336 = vld [vmem:[%s2 + $0x3b0] sm:$0xff]
      %v337 = vld [vmem:[%s2 + $0x3b8] sm:$0xff]
      %v338 = vld [vmem:[%s2 + $0x3c0] sm:$0xff]
      %v339 = vld [vmem:[%s2 + $0x3c8] sm:$0xff]
      %v340 = vld [vmem:[%s2 + $0x3d0] sm:$0xff]
      %v341 = vld [vmem:[%s2 + $0x3d8] sm:$0xff]
      %v342 = vld [vmem:[%s2 + $0x3e0] sm:$0xff]
      %v343 = vld [vmem:[%s2 + $0x3e8] sm:$0xff]
      %v344 = vld [vmem:[%s2 + $0x3f0] sm:$0xff]
      %v345 = vld [vmem:[%s2 + $0x3f8] sm:$0xff]
      %v346 = vld [vmem:[%s2 + $0x400] sm:$0xff]
      %v347 = vld [vmem:[%s2 + $0x408] sm:$0xff]
      %v348 = vld [vmem:[%s2 + $0x410] sm:$0xff]
      %v349 = vld [vmem:[%s2 + $0x418] sm:$0xff]
      %v350 = vld [vmem:[%s2 + $0x420] sm:$0xff]
      %v351 = vld [vmem:[%s2 + $0x428] sm:$0xff]
      %v352 = vld [vmem:[%s2 + $0x430] sm:$0xff]
      %v353 = vld [vmem:[%s2 + $0x438] sm:$0xff]
      %v354 = vld [vmem:[%s2 + $0x440] sm:$0xff]
      %v355 = vld [vmem:[%s2 + $0x448] sm:$0xff]
      %v356 = vld [vmem:[%s2 + $0x450] sm:$0xff]
      %v357 = vld [vmem:[%s2 + $0x458] sm:$0xff]
      %v358 = vld [vmem:[%s2 + $0x460] sm:$0xff]
      %v359 = vld [vmem:[%s2 + $0x468] sm:$0xff]
      %v360 = vld [vmem:[%s2 + $0x470] sm:$0xff]
      %v361 = vld [vmem:[%s2 + $0x478] sm:$0xff]
      %v362 = vld [vmem:[%s2 + $0x480] sm:$0xff]
      %v363 = vld [vmem:[%s2 + $0x488] sm:$0xff]
      %v364 = vld [vmem:[%s2 + $0x490] sm:$0xff]
      %v365 = vld [vmem:[%s2 + $0x498] sm:$0xff]
      %v366 = vld [vmem:[%s2 + $0x4a0] sm:$0xff]
      %v367 = vld [vmem:[%s2 + $0x4a8] sm:$0xff]
      %v368 = vld [vmem:[%s2 + $0x4b0] sm:$0xff]
      %v369 = vld [vmem:[%s2 + $0x4b8] sm:$0xff]
      %v370 = vld [vmem:[%s2 + $0x4c0] sm:$0xff]
      %v371 = vld [vmem:[%s2 + $0x4c8] sm:$0xff]
      %v372 = vld [vmem:[%s2 + $0x4d0] sm:$0xff]
      %v373 = vld [vmem:[%s2 + $0x4d8] sm:$0xff]
      %v374 = vld [vmem:[%s2 + $0x4e0] sm:$0xff]
      %v375 = vld [vmem:[%s2 + $0x4e8] sm:$0xff]
      %v376 = vld [vmem:[%s2 + $0x4f0] sm:$0xff]
      %v377 = vld [vmem:[%s2 + $0x4f8] sm:$0xff]
      %v378 = vld [vmem:[%s2 + $0x500] sm:$0xff]
      %v379 = vld [vmem:[%s2 + $0x508] sm:$0xff]
      %v380 = vld [vmem:[%s2 + $0x510] sm:$0xff]
      %v381 = vld [vmem:[%s2 + $0x518] sm:$0xff]
      %v382 = vld [vmem:[%s2 + $0x520] sm:$0xff]
      %v383 = vld [vmem:[%s2 + $0x528] sm:$0xff]
      %v384 = vld [vmem:[%s2 + $0x530] sm:$0xff]
      %v385 = vld [vmem:[%s2 + $0x538] sm:$0xff]
      %v386 = vld [vmem:[%s2 + $0x540] sm:$0xff]
      %v387 = vld [vmem:[%s2 + $0x548] sm:$0xff]
      %v388 = vld [vmem:[%s2 + $0x550] sm:$0xff]
      %v389 = vld [vmem:[%s2 + $0x558] sm:$0xff]
      %v390 = vld [vmem:[%s2 + $0x560] sm:$0xff]
      %v391 = vld [vmem:[%s2 + $0x568] sm:$0xff]
      %v392 = vld [vmem:[%s2 + $0x570] sm:$0xff]
      %v393 = vld [vmem:[%s2 + $0x578] sm:$0xff]
      %v394 = vld [vmem:[%s2 + $0x580] sm:$0xff]
      %v395 = vld [vmem:[%s2 + $0x588] sm:$0xff]
      %v396 = vld [vmem:[%s2 + $0x590] sm:$0xff]
      %v397 = vld [vmem:[%s2 + $0x598] sm:$0xff]
      %v398 = vld [vmem:[%s2 + $0x5a0] sm:$0xff]
      %v399 = vld [vmem:[%s2 + $0x5a8] sm:$0xff]
      %v400 = vld [vmem:[%s2 + $0x5b0] sm:$0xff]
      %v401 = vld [vmem:[%s2 + $0x5b8] sm:$0xff]
      %v402 = vld [vmem:[%s2 + $0x5c0] sm:$0xff]
      %v403 = vld [vmem:[%s2 + $0x5c8] sm:$0xff]
      %v404 = vld [vmem:[%s2 + $0x5d0] sm:$0xff]
      %v405 = vld [vmem:[%s2 + $0x5d8] sm:$0xff]
      %v406 = vld [vmem:[%s2 + $0x5e0] sm:$0xff]
      %v407 = vld [vmem:[%s2 + $0x5e8] sm:$0xff]
      %v408 = vld [vmem:[%s2 + $0x5f0] sm:$0xff]
      %v409 = vld [vmem:[%s2 + $0x5f8] sm:$0xff]
      %v410 = vld [vmem:[%s2 + $0x600] sm:$0xff]
      %v411 = vld [vmem:[%s2 + $0x608] sm:$0xff]
      %v412 = vld [vmem:[%s2 + $0x610] sm:$0xff]
      %v413 = vld [vmem:[%s2 + $0x618] sm:$0xff]
      %v414 = vld [vmem:[%s2 + $0x620] sm:$0xff]
      %v415 = vld [vmem:[%s2 + $0x628] sm:$0xff]
      %v416 = vld [vmem:[%s2 + $0x630] sm:$0xff]
      %v417 = vld [vmem:[%s2 + $0x638] sm:$0xff]
      %v418 = vld [vmem:[%s2 + $0x640] sm:$0xff]
      %v419 = vld [vmem:[%s2 + $0x648] sm:$0xff]
      %v420 = vld [vmem:[%s2 + $0x650] sm:$0xff]
      %v421 = vld [vmem:[%s2 + $0x658] sm:$0xff]
      %v422 = vld [vmem:[%s2 + $0x660] sm:$0xff]
      %v423 = vld [vmem:[%s2 + $0x668] sm:$0xff]
      %v424 = vld [vmem:[%s2 + $0x670] sm:$0xff]
      %v425 = vld [vmem:[%s2 + $0x678] sm:$0xff]
      %v426 = vld [vmem:[%s2 + $0x680] sm:$0xff]
      %v427 = vld [vmem:[%s2 + $0x688] sm:$0xff]
      %v428 = vld [vmem:[%s2 + $0x690] sm:$0xff]
      %v429 = vld [vmem:[%s2 + $0x698] sm:$0xff]
      %v430 = vld [vmem:[%s2 + $0x6a0] sm:$0xff]
      %v431 = vld [vmem:[%s2 + $0x6a8] sm:$0xff]
      %v432 = vld [vmem:[%s2 + $0x6b0] sm:$0xff]
      %v433 = vld [vmem:[%s2 + $0x6b8] sm:$0xff]
      %v434 = vld [vmem:[%s2 + $0x6c0] sm:$0xff]
      %v435 = vld [vmem:[%s2 + $0x6c8] sm:$0xff]
      %v436 = vld [vmem:[%s2 + $0x6d0] sm:$0xff]
      %v437 = vld [vmem:[%s2 + $0x6d8] sm:$0xff]
      %v438 = vld [vmem:[%s2 + $0x6e0] sm:$0xff]
      %v439 = vld [vmem:[%s2 + $0x6e8] sm:$0xff]
      %v440 = vld [vmem:[%s2 + $0x6f0] sm:$0xff]
      %v441 = vld [vmem:[%s2 + $0x6f8] sm:$0xff]
      %v442 = vld [vmem:[%s2 + $0x700] sm:$0xff]
      %v443 = vld [vmem:[%s2 + $0x708] sm:$0xff]
      %v444 = vld [vmem:[%s2 + $0x710] sm:$0xff]
      %v445 = vld [vmem:[%s2 + $0x718] sm:$0xff]
      %v446 = vld [vmem:[%s2 + $0x720] sm:$0xff]
      %v447 = vld [vmem:[%s2 + $0x728] sm:$0xff]
      %v448 = vld [vmem:[%s2 + $0x730] sm:$0xff]
      %v449 = vld [vmem:[%s2 + $0x738] sm:$0xff]
      %v450 = vld [vmem:[%s2 + $0x740] sm:$0xff]
      %v451 = vld [vmem:[%s2 + $0x748] sm:$0xff]
      %v452 = vld [vmem:[%s2 + $0x750] sm:$0xff]
      %v453 = vld [vmem:[%s2 + $0x758] sm:$0xff]
      %v454 = vld [vmem:[%s2 + $0x760] sm:$0xff]
      %v455 = vld [vmem:[%s2 + $0x768] sm:$0xff]
      %v456 = vld [vmem:[%s2 + $0x770] sm:$0xff]
      %v457 = vld [vmem:[%s2 + $0x778] sm:$0xff]
      %v458 = vld [vmem:[%s2 + $0x780] sm:$0xff]
      %v459 = vld [vmem:[%s2 + $0x788] sm:$0xff]
      %v460 = vld [vmem:[%s2 + $0x790] sm:$0xff]
      %v461 = vld [vmem:[%s2 + $0x798] sm:$0xff]
      %v462 = vld [vmem:[%s2 + $0x7a0] sm:$0xff]
      %v463 = vld [vmem:[%s2 + $0x7a8] sm:$0xff]
      %v464 = vld [vmem:[%s2 + $0x7b0] sm:$0xff]
      %v465 = vld [vmem:[%s2 + $0x7b8] sm:$0xff]
      %v466 = vld [vmem:[%s2 + $0x7c0] sm:$0xff]
      %v467 = vld [vmem:[%s2 + $0x7c8] sm:$0xff]
      %v468 = vld [vmem:[%s2 + $0x7d0] sm:$0xff]
      %v469 = vld [vmem:[%s2 + $0x7d8] sm:$0xff]
      %v470 = vld [vmem:[%s2 + $0x7e0] sm:$0xff]
      %v471 = vld [vmem:[%s2 + $0x7e8] sm:$0xff]
      %v472 = vld [vmem:[%s2 + $0x7f0] sm:$0xff]
      %v473 = vld [vmem:[%s2 + $0x7f8] sm:$0xff]
      %v474 = vld [vmem:[%s2 + $0x800] sm:$0xff]
      %v475 = vld [vmem:[%s2 + $0x808] sm:$0xff]
      %v476 = vld [vmem:[%s2 + $0x810] sm:$0xff]
      %v477 = vld [vmem:[%s2 + $0x818] sm:$0xff]
      %v478 = vld [vmem:[%s2 + $0x820] sm:$0xff]
      %v479 = vld [vmem:[%s2 + $0x828] sm:$0xff]
      %v480 = vld [vmem:[%s2 + $0x830] sm:$0xff]
      %v481 = vld [vmem:[%s2 + $0x838] sm:$0xff]
      %v482 = vld [vmem:[%s2 + $0x840] sm:$0xff]
      %v483 = vld [vmem:[%s2 + $0x848] sm:$0xff]
      %v484 = vld [vmem:[%s2 + $0x850] sm:$0xff]
      %v485 = vld [vmem:[%s2 + $0x858] sm:$0xff]
      %v486 = vld [vmem:[%s2 + $0x860] sm:$0xff]
      %v487 = vld [vmem:[%s2 + $0x868] sm:$0xff]
      %v488 = vld [vmem:[%s2 + $0x870] sm:$0xff]
      %v489 = vld [vmem:[%s2 + $0x878] sm:$0xff]
      %v490 = vld [vmem:[%s2 + $0x880] sm:$0xff]
      %v491 = vld [vmem:[%s2 + $0x888] sm:$0xff]
      %v492 = vld [vmem:[%s2 + $0x890] sm:$0xff]
      %v493 = vld [vmem:[%s2 + $0x898] sm:$0xff]
      %v494 = vld [vmem:[%s2 + $0x8a0] sm:$0xff]
      %v495 = vld [vmem:[%s2 + $0x8a8] sm:$0xff]
      %v496 = vld [vmem:[%s2 + $0x8b0] sm:$0xff]
      %v497 = vld [vmem:[%s2 + $0x8b8] sm:$0xff]
      %v498 = vld [vmem:[%s2 + $0x8c0] sm:$0xff]
      %v499 = vld [vmem:[%s2 + $0x8c8] sm:$0xff]
      %v500 = vld [vmem:[%s2 + $0x8d0] sm:$0xff]
      %v501 = vld [vmem:[%s2 + $0x8d8] sm:$0xff]
      %v502 = vld [vmem:[%s2 + $0x8e0] sm:$0xff]
      %v503 = vld [vmem:[%s2 + $0x8e8] sm:$0xff]
      %v504 = vld [vmem:[%s2 + $0x8f0] sm:$0xff]
      %v505 = vld [vmem:[%s2 + $0x8f8] sm:$0xff]
      %v506 = vld [vmem:[%s3] sm:$0x3f]
      %v508 = vlaneseq
      %v509 = vshrl.u32 %v508, 7
      %v510 = vsub.s32 0, %v509
      %v511 = vrot.slane %v506, %v510
      %v512 = vlaneseq
      %v513 = vshrl.u32 %v512, 7
      %v514 = vsub.s32 1, %v513
      %v515 = vrot.slane %v506, %v514
      %v516 = vlaneseq
      %v517 = vshrl.u32 %v516, 7
      %v518 = vsub.s32 2, %v517
      %v519 = vrot.slane %v506, %v518
      %v520 = vlaneseq
      %v521 = vshrl.u32 %v520, 7
      %v522 = vsub.s32 3, %v521
      %v523 = vrot.slane %v506, %v522
      %v524 = vlaneseq
      %v525 = vshrl.u32 %v524, 7
      %v526 = vsub.s32 4, %v525
      %v527 = vrot.slane %v506, %v526
      %v528 = vlaneseq
      %v529 = vshrl.u32 %v528, 7
      %v530 = vsub.s32 5, %v529
      %v531 = vrot.slane %v506, %v530
      %v541 = vunpack.c.l.b16 %v215
      %v542 = vunpack.c.h.b16 %v215
      %v543 = vunpack.c.l.b16 %v216
      %v544 = vunpack.c.h.b16 %v216
      %v545 = vunpack.c.l.b16 %v217
      %v546 = vunpack.c.h.b16 %v217
      %v547 = vpack.c.b16 %v541, %v541
      %v548 = vpack.c.b16 %v542, %v542
      %v549 = vpack.c.b16 %v543, %v543
      %v550 = vpack.c.b16 %v544, %v544
      %v551 = vpack.c.b16 %v545, %v545
      %v552 = vpack.c.b16 %v546, %v546
      %v847 = vunpack.c.l.b16 %v218
      %v848 = vunpack.c.h.b16 %v218
      %v849 = vunpack.c.l.b16 %v219
      %v850 = vunpack.c.h.b16 %v219
      %v851 = vunpack.c.l.b16 %v220
      %v852 = vunpack.c.h.b16 %v220
      %v853 = vunpack.c.l.b16 %v221
      %v854 = vunpack.c.h.b16 %v221
      %v855 = vunpack.c.l.b16 %v222
      %v856 = vunpack.c.h.b16 %v222
      %v857 = vunpack.c.l.b16 %v223
      %v858 = vunpack.c.h.b16 %v223
      %v859 = vunpack.c.l.b16 %v224
      %v860 = vunpack.c.h.b16 %v224
      %v861 = vunpack.c.l.b16 %v225
      %v862 = vunpack.c.h.b16 %v225
      %v863 = vunpack.c.l.b16 %v226
      %v864 = vunpack.c.h.b16 %v226
      %v865 = vunpack.c.l.b16 %v227
      %v866 = vunpack.c.h.b16 %v227
      %v867 = vunpack.c.l.b16 %v228
      %v868 = vunpack.c.h.b16 %v228
      %v869 = vunpack.c.l.b16 %v229
      %v870 = vunpack.c.h.b16 %v229
      %v871 = vunpack.c.l.b16 %v230
      %v872 = vunpack.c.h.b16 %v230
      %v873 = vunpack.c.l.b16 %v231
      %v874 = vunpack.c.h.b16 %v231
      %v875 = vunpack.c.l.b16 %v232
      %v876 = vunpack.c.h.b16 %v232
      %v877 = vunpack.c.l.b16 %v233
      %v878 = vunpack.c.h.b16 %v233
      %v879 = vunpack.c.l.b16 %v234
      %v880 = vunpack.c.h.b16 %v234
      %v881 = vunpack.c.l.b16 %v235
      %v882 = vunpack.c.h.b16 %v235
      %v883 = vunpack.c.l.b16 %v236
      %v884 = vunpack.c.h.b16 %v236
      %v885 = vunpack.c.l.b16 %v237
      %v886 = vunpack.c.h.b16 %v237
      %v887 = vunpack.c.l.b16 %v238
      %v888 = vunpack.c.h.b16 %v238
      %v889 = vunpack.c.l.b16 %v239
      %v890 = vunpack.c.h.b16 %v239
      %v891 = vunpack.c.l.b16 %v240
      %v892 = vunpack.c.h.b16 %v240
      %v893 = vunpack.c.l.b16 %v241
      %v894 = vunpack.c.h.b16 %v241
      %v895 = vunpack.c.l.b16 %v242
      %v896 = vunpack.c.h.b16 %v242
      %v897 = vunpack.c.l.b16 %v243
      %v898 = vunpack.c.h.b16 %v243
      %v899 = vunpack.c.l.b16 %v244
      %v900 = vunpack.c.h.b16 %v244
      %v901 = vunpack.c.l.b16 %v245
      %v902 = vunpack.c.h.b16 %v245
      %v903 = vunpack.c.l.b16 %v246
      %v904 = vunpack.c.h.b16 %v246
      %v905 = vunpack.c.l.b16 %v247
      %v906 = vunpack.c.h.b16 %v247
      %v907 = vunpack.c.l.b16 %v248
      %v908 = vunpack.c.h.b16 %v248
      %v909 = vunpack.c.l.b16 %v249
      %v910 = vunpack.c.h.b16 %v249
      %v911 = vunpack.c.l.b16 %v250
      %v912 = vunpack.c.h.b16 %v250
      %v913 = vunpack.c.l.b16 %v251
      %v914 = vunpack.c.h.b16 %v251
      %v915 = vunpack.c.l.b16 %v252
      %v916 = vunpack.c.h.b16 %v252
      %v917 = vunpack.c.l.b16 %v253
      %v918 = vunpack.c.h.b16 %v253
      %v919 = vunpack.c.l.b16 %v254
      %v920 = vunpack.c.h.b16 %v254
      %v921 = vunpack.c.l.b16 %v255
      %v922 = vunpack.c.h.b16 %v255
      %v923 = vunpack.c.l.b16 %v256
      %v924 = vunpack.c.h.b16 %v256
      %v925 = vunpack.c.l.b16 %v257
      %v926 = vunpack.c.h.b16 %v257
      %v927 = vunpack.c.l.b16 %v258
      %v928 = vunpack.c.h.b16 %v258
      %v929 = vunpack.c.l.b16 %v259
      %v930 = vunpack.c.h.b16 %v259
      %v931 = vunpack.c.l.b16 %v260
      %v932 = vunpack.c.h.b16 %v260
      %v933 = vunpack.c.l.b16 %v261
      %v934 = vunpack.c.h.b16 %v261
      %v935 = vunpack.c.l.b16 %v262
      %v936 = vunpack.c.h.b16 %v262
      %v937 = vunpack.c.l.b16 %v263
      %v938 = vunpack.c.h.b16 %v263
      %v939 = vunpack.c.l.b16 %v264
      %v940 = vunpack.c.h.b16 %v264
      %v941 = vunpack.c.l.b16 %v265
      %v942 = vunpack.c.h.b16 %v265
      %v943 = vunpack.c.l.b16 %v266
      %v944 = vunpack.c.h.b16 %v266
      %v945 = vunpack.c.l.b16 %v267
      %v946 = vunpack.c.h.b16 %v267
      %v947 = vunpack.c.l.b16 %v268
      %v948 = vunpack.c.h.b16 %v268
      %v949 = vunpack.c.l.b16 %v269
      %v950 = vunpack.c.h.b16 %v269
      %v951 = vunpack.c.l.b16 %v270
      %v952 = vunpack.c.h.b16 %v270
      %v953 = vunpack.c.l.b16 %v271
      %v954 = vunpack.c.h.b16 %v271
      %v955 = vunpack.c.l.b16 %v272
      %v956 = vunpack.c.h.b16 %v272
      %v957 = vunpack.c.l.b16 %v273
      %v958 = vunpack.c.h.b16 %v273
      %v959 = vunpack.c.l.b16 %v274
      %v960 = vunpack.c.h.b16 %v274
      %v961 = vunpack.c.l.b16 %v275
      %v962 = vunpack.c.h.b16 %v275
      %v963 = vunpack.c.l.b16 %v276
      %v964 = vunpack.c.h.b16 %v276
      %v965 = vunpack.c.l.b16 %v277
      %v966 = vunpack.c.h.b16 %v277
      %v967 = vunpack.c.l.b16 %v278
      %v968 = vunpack.c.h.b16 %v278
      %v969 = vunpack.c.l.b16 %v279
      %v970 = vunpack.c.h.b16 %v279
      %v971 = vunpack.c.l.b16 %v280
      %v972 = vunpack.c.h.b16 %v280
      %v973 = vunpack.c.l.b16 %v281
      %v974 = vunpack.c.h.b16 %v281
      %v975 = vunpack.c.l.b16 %v282
      %v976 = vunpack.c.h.b16 %v282
      %v977 = vunpack.c.l.b16 %v283
      %v978 = vunpack.c.h.b16 %v283
      %v979 = vunpack.c.l.b16 %v284
      %v980 = vunpack.c.h.b16 %v284
      %v981 = vunpack.c.l.b16 %v285
      %v982 = vunpack.c.h.b16 %v285
      %v983 = vunpack.c.l.b16 %v286
      %v984 = vunpack.c.h.b16 %v286
      %v985 = vunpack.c.l.b16 %v287
      %v986 = vunpack.c.h.b16 %v287
      %v987 = vunpack.c.l.b16 %v288
      %v988 = vunpack.c.h.b16 %v288
      %v989 = vunpack.c.l.b16 %v289
      %v990 = vunpack.c.h.b16 %v289
      %v991 = vunpack.c.l.b16 %v290
      %v992 = vunpack.c.h.b16 %v290
      %v993 = vunpack.c.l.b16 %v291
      %v994 = vunpack.c.h.b16 %v291
      %v995 = vunpack.c.l.b16 %v292
      %v996 = vunpack.c.h.b16 %v292
      %v997 = vunpack.c.l.b16 %v293
      %v998 = vunpack.c.h.b16 %v293
      %v999 = vunpack.c.l.b16 %v294
      %v1000 = vunpack.c.h.b16 %v294
      %v1001 = vunpack.c.l.b16 %v295
      %v1002 = vunpack.c.h.b16 %v295
      %v1003 = vunpack.c.l.b16 %v296
      %v1004 = vunpack.c.h.b16 %v296
      %v1005 = vunpack.c.l.b16 %v297
      %v1006 = vunpack.c.h.b16 %v297
      %v1007 = vunpack.c.l.b16 %v298
      %v1008 = vunpack.c.h.b16 %v298
      %v1009 = vunpack.c.l.b16 %v299
      %v1010 = vunpack.c.h.b16 %v299
      %v1011 = vunpack.c.l.b16 %v300
      %v1012 = vunpack.c.h.b16 %v300
      %v1013 = vunpack.c.l.b16 %v301
      %v1014 = vunpack.c.h.b16 %v301
      %v1015 = vunpack.c.l.b16 %v302
      %v1016 = vunpack.c.h.b16 %v302
      %v1017 = vunpack.c.l.b16 %v303
      %v1018 = vunpack.c.h.b16 %v303
      %v1019 = vunpack.c.l.b16 %v304
      %v1020 = vunpack.c.h.b16 %v304
      %v1021 = vunpack.c.l.b16 %v305
      %v1022 = vunpack.c.h.b16 %v305
      %v1023 = vunpack.c.l.b16 %v306
      %v1024 = vunpack.c.h.b16 %v306
      %v1025 = vunpack.c.l.b16 %v307
      %v1026 = vunpack.c.h.b16 %v307
      %v1027 = vunpack.c.l.b16 %v308
      %v1028 = vunpack.c.h.b16 %v308
      %v1029 = vunpack.c.l.b16 %v309
      %v1030 = vunpack.c.h.b16 %v309
      %v1031 = vunpack.c.l.b16 %v310
      %v1032 = vunpack.c.h.b16 %v310
      %v1033 = vunpack.c.l.b16 %v311
      %v1034 = vunpack.c.h.b16 %v311
      %v1035 = vunpack.c.l.b16 %v312
      %v1036 = vunpack.c.h.b16 %v312
      %v1037 = vunpack.c.l.b16 %v313
      %v1038 = vunpack.c.h.b16 %v313
      %v1039 = vunpack.c.l.b16 %v314
      %v1040 = vunpack.c.h.b16 %v314
      %v1041 = vunpack.c.l.b16 %v315
      %v1042 = vunpack.c.h.b16 %v315
      %v1043 = vunpack.c.l.b16 %v316
      %v1044 = vunpack.c.h.b16 %v316
      %v1045 = vunpack.c.l.b16 %v317
      %v1046 = vunpack.c.h.b16 %v317
      %v1047 = vunpack.c.l.b16 %v318
      %v1048 = vunpack.c.h.b16 %v318
      %v1049 = vunpack.c.l.b16 %v319
      %v1050 = vunpack.c.h.b16 %v319
      %v1051 = vunpack.c.l.b16 %v320
      %v1052 = vunpack.c.h.b16 %v320
      %v1053 = vunpack.c.l.b16 %v321
      %v1054 = vunpack.c.h.b16 %v321
      %v1055 = vunpack.c.l.b16 %v322
      %v1056 = vunpack.c.h.b16 %v322
      %v1057 = vunpack.c.l.b16 %v323
      %v1058 = vunpack.c.h.b16 %v323
      %v1059 = vunpack.c.l.b16 %v324
      %v1060 = vunpack.c.h.b16 %v324
      %v1061 = vunpack.c.l.b16 %v325
      %v1062 = vunpack.c.h.b16 %v325
      %v1063 = vunpack.c.l.b16 %v326
      %v1064 = vunpack.c.h.b16 %v326
      %v1065 = vunpack.c.l.b16 %v327
      %v1066 = vunpack.c.h.b16 %v327
      %v1067 = vunpack.c.l.b16 %v328
      %v1068 = vunpack.c.h.b16 %v328
      %v1069 = vunpack.c.l.b16 %v329
      %v1070 = vunpack.c.h.b16 %v329
      %v1071 = vunpack.c.l.b16 %v330
      %v1072 = vunpack.c.h.b16 %v330
      %v1073 = vunpack.c.l.b16 %v331
      %v1074 = vunpack.c.h.b16 %v331
      %v1075 = vunpack.c.l.b16 %v332
      %v1076 = vunpack.c.h.b16 %v332
      %v1077 = vunpack.c.l.b16 %v333
      %v1078 = vunpack.c.h.b16 %v333
      %v1079 = vunpack.c.l.b16 %v334
      %v1080 = vunpack.c.h.b16 %v334
      %v1081 = vunpack.c.l.b16 %v335
      %v1082 = vunpack.c.h.b16 %v335
      %v1083 = vunpack.c.l.b16 %v336
      %v1084 = vunpack.c.h.b16 %v336
      %v1085 = vunpack.c.l.b16 %v337
      %v1086 = vunpack.c.h.b16 %v337
      %v1087 = vunpack.c.l.b16 %v338
      %v1088 = vunpack.c.h.b16 %v338
      %v1089 = vunpack.c.l.b16 %v339
      %v1090 = vunpack.c.h.b16 %v339
      %v1091 = vunpack.c.l.b16 %v340
      %v1092 = vunpack.c.h.b16 %v340
      %v1093 = vunpack.c.l.b16 %v341
      %v1094 = vunpack.c.h.b16 %v341
      %v1095 = vunpack.c.l.b16 %v342
      %v1096 = vunpack.c.h.b16 %v342
      %v1097 = vunpack.c.l.b16 %v343
      %v1098 = vunpack.c.h.b16 %v343
      %v1099 = vunpack.c.l.b16 %v344
      %v1100 = vunpack.c.h.b16 %v344
      %v1101 = vunpack.c.l.b16 %v345
      %v1102 = vunpack.c.h.b16 %v345
      %v1103 = vunpack.c.l.b16 %v346
      %v1104 = vunpack.c.h.b16 %v346
      %v1105 = vunpack.c.l.b16 %v347
      %v1106 = vunpack.c.h.b16 %v347
      %v1107 = vunpack.c.l.b16 %v348
      %v1108 = vunpack.c.h.b16 %v348
      %v1109 = vunpack.c.l.b16 %v349
      %v1110 = vunpack.c.h.b16 %v349
      %v1111 = vunpack.c.l.b16 %v350
      %v1112 = vunpack.c.h.b16 %v350
      %v1113 = vunpack.c.l.b16 %v351
      %v1114 = vunpack.c.h.b16 %v351
      %v1115 = vunpack.c.l.b16 %v352
      %v1116 = vunpack.c.h.b16 %v352
      %v1117 = vunpack.c.l.b16 %v353
      %v1118 = vunpack.c.h.b16 %v353
      %v1119 = vunpack.c.l.b16 %v354
      %v1120 = vunpack.c.h.b16 %v354
      %v1121 = vunpack.c.l.b16 %v355
      %v1122 = vunpack.c.h.b16 %v355
      %v1123 = vunpack.c.l.b16 %v356
      %v1124 = vunpack.c.h.b16 %v356
      %v1125 = vunpack.c.l.b16 %v357
      %v1126 = vunpack.c.h.b16 %v357
      %v1127 = vunpack.c.l.b16 %v358
      %v1128 = vunpack.c.h.b16 %v358
      %v1129 = vunpack.c.l.b16 %v359
      %v1130 = vunpack.c.h.b16 %v359
      %v1131 = vunpack.c.l.b16 %v360
      %v1132 = vunpack.c.h.b16 %v360
      %v1133 = vunpack.c.l.b16 %v361
      %v1134 = vunpack.c.h.b16 %v361
      %v1135 = vunpack.c.l.b16 %v362
      %v1136 = vunpack.c.h.b16 %v362
      %v1137 = vunpack.c.l.b16 %v363
      %v1138 = vunpack.c.h.b16 %v363
      %v1139 = vunpack.c.l.b16 %v364
      %v1140 = vunpack.c.h.b16 %v364
      %v1141 = vunpack.c.l.b16 %v365
      %v1142 = vunpack.c.h.b16 %v365
      %v1143 = vunpack.c.l.b16 %v366
      %v1144 = vunpack.c.h.b16 %v366
      %v1145 = vunpack.c.l.b16 %v367
      %v1146 = vunpack.c.h.b16 %v367
      %v1147 = vunpack.c.l.b16 %v368
      %v1148 = vunpack.c.h.b16 %v368
      %v1149 = vunpack.c.l.b16 %v369
      %v1150 = vunpack.c.h.b16 %v369
      %v1151 = vunpack.c.l.b16 %v370
      %v1152 = vunpack.c.h.b16 %v370
      %v1153 = vunpack.c.l.b16 %v371
      %v1154 = vunpack.c.h.b16 %v371
      %v1155 = vunpack.c.l.b16 %v372
      %v1156 = vunpack.c.h.b16 %v372
      %v1157 = vunpack.c.l.b16 %v373
      %v1158 = vunpack.c.h.b16 %v373
      %v1159 = vunpack.c.l.b16 %v374
      %v1160 = vunpack.c.h.b16 %v374
      %v1161 = vunpack.c.l.b16 %v375
      %v1162 = vunpack.c.h.b16 %v375
      %v1163 = vunpack.c.l.b16 %v376
      %v1164 = vunpack.c.h.b16 %v376
      %v1165 = vunpack.c.l.b16 %v377
      %v1166 = vunpack.c.h.b16 %v377
      %v1167 = vunpack.c.l.b16 %v378
      %v1168 = vunpack.c.h.b16 %v378
      %v1169 = vunpack.c.l.b16 %v379
      %v1170 = vunpack.c.h.b16 %v379
      %v1171 = vunpack.c.l.b16 %v380
      %v1172 = vunpack.c.h.b16 %v380
      %v1173 = vunpack.c.l.b16 %v381
      %v1174 = vunpack.c.h.b16 %v381
      %v1175 = vunpack.c.l.b16 %v382
      %v1176 = vunpack.c.h.b16 %v382
      %v1177 = vunpack.c.l.b16 %v383
      %v1178 = vunpack.c.h.b16 %v383
      %v1179 = vunpack.c.l.b16 %v384
      %v1180 = vunpack.c.h.b16 %v384
      %v1181 = vunpack.c.l.b16 %v385
      %v1182 = vunpack.c.h.b16 %v385
      %v1183 = vunpack.c.l.b16 %v386
      %v1184 = vunpack.c.h.b16 %v386
      %v1185 = vunpack.c.l.b16 %v387
      %v1186 = vunpack.c.h.b16 %v387
      %v1187 = vunpack.c.l.b16 %v388
      %v1188 = vunpack.c.h.b16 %v388
      %v1189 = vunpack.c.l.b16 %v389
      %v1190 = vunpack.c.h.b16 %v389
      %v1191 = vunpack.c.l.b16 %v390
      %v1192 = vunpack.c.h.b16 %v390
      %v1193 = vunpack.c.l.b16 %v391
      %v1194 = vunpack.c.h.b16 %v391
      %v1195 = vunpack.c.l.b16 %v392
      %v1196 = vunpack.c.h.b16 %v392
      %v1197 = vunpack.c.l.b16 %v393
      %v1198 = vunpack.c.h.b16 %v393
      %v1199 = vunpack.c.l.b16 %v394
      %v1200 = vunpack.c.h.b16 %v394
      %v1201 = vunpack.c.l.b16 %v395
      %v1202 = vunpack.c.h.b16 %v395
      %v1203 = vunpack.c.l.b16 %v396
      %v1204 = vunpack.c.h.b16 %v396
      %v1205 = vunpack.c.l.b16 %v397
      %v1206 = vunpack.c.h.b16 %v397
      %v1207 = vunpack.c.l.b16 %v398
      %v1208 = vunpack.c.h.b16 %v398
      %v1209 = vunpack.c.l.b16 %v399
      %v1210 = vunpack.c.h.b16 %v399
      %v1211 = vunpack.c.l.b16 %v400
      %v1212 = vunpack.c.h.b16 %v400
      %v1213 = vunpack.c.l.b16 %v401
      %v1214 = vunpack.c.h.b16 %v401
      %v1215 = vunpack.c.l.b16 %v402
      %v1216 = vunpack.c.h.b16 %v402
      %v1217 = vunpack.c.l.b16 %v403
      %v1218 = vunpack.c.h.b16 %v403
      %v1219 = vunpack.c.l.b16 %v404
      %v1220 = vunpack.c.h.b16 %v404
      %v1221 = vunpack.c.l.b16 %v405
      %v1222 = vunpack.c.h.b16 %v405
      %v1223 = vunpack.c.l.b16 %v406
      %v1224 = vunpack.c.h.b16 %v406
      %v1225 = vunpack.c.l.b16 %v407
      %v1226 = vunpack.c.h.b16 %v407
      %v1227 = vunpack.c.l.b16 %v408
      %v1228 = vunpack.c.h.b16 %v408
      %v1229 = vunpack.c.l.b16 %v409
      %v1230 = vunpack.c.h.b16 %v409
      %v1231 = vunpack.c.l.b16 %v410
      %v1232 = vunpack.c.h.b16 %v410
      %v1233 = vunpack.c.l.b16 %v411
      %v1234 = vunpack.c.h.b16 %v411
      %v1235 = vunpack.c.l.b16 %v412
      %v1236 = vunpack.c.h.b16 %v412
      %v1237 = vunpack.c.l.b16 %v413
      %v1238 = vunpack.c.h.b16 %v413
      %v1239 = vunpack.c.l.b16 %v414
      %v1240 = vunpack.c.h.b16 %v414
      %v1241 = vunpack.c.l.b16 %v415
      %v1242 = vunpack.c.h.b16 %v415
      %v1243 = vunpack.c.l.b16 %v416
      %v1244 = vunpack.c.h.b16 %v416
      %v1245 = vunpack.c.l.b16 %v417
      %v1246 = vunpack.c.h.b16 %v417
      %v1247 = vunpack.c.l.b16 %v418
      %v1248 = vunpack.c.h.b16 %v418
      %v1249 = vunpack.c.l.b16 %v419
      %v1250 = vunpack.c.h.b16 %v419
      %v1251 = vunpack.c.l.b16 %v420
      %v1252 = vunpack.c.h.b16 %v420
      %v1253 = vunpack.c.l.b16 %v421
      %v1254 = vunpack.c.h.b16 %v421
      %v1255 = vunpack.c.l.b16 %v422
      %v1256 = vunpack.c.h.b16 %v422
      %v1257 = vunpack.c.l.b16 %v423
      %v1258 = vunpack.c.h.b16 %v423
      %v1259 = vunpack.c.l.b16 %v424
      %v1260 = vunpack.c.h.b16 %v424
      %v1261 = vunpack.c.l.b16 %v425
      %v1262 = vunpack.c.h.b16 %v425
      %v1263 = vunpack.c.l.b16 %v426
      %v1264 = vunpack.c.h.b16 %v426
      %v1265 = vunpack.c.l.b16 %v427
      %v1266 = vunpack.c.h.b16 %v427
      %v1267 = vunpack.c.l.b16 %v428
      %v1268 = vunpack.c.h.b16 %v428
      %v1269 = vunpack.c.l.b16 %v429
      %v1270 = vunpack.c.h.b16 %v429
      %v1271 = vunpack.c.l.b16 %v430
      %v1272 = vunpack.c.h.b16 %v430
      %v1273 = vunpack.c.l.b16 %v431
      %v1274 = vunpack.c.h.b16 %v431
      %v1275 = vunpack.c.l.b16 %v432
      %v1276 = vunpack.c.h.b16 %v432
      %v1277 = vunpack.c.l.b16 %v433
      %v1278 = vunpack.c.h.b16 %v433
      %v1279 = vunpack.c.l.b16 %v434
      %v1280 = vunpack.c.h.b16 %v434
      %v1281 = vunpack.c.l.b16 %v435
      %v1282 = vunpack.c.h.b16 %v435
      %v1283 = vunpack.c.l.b16 %v436
      %v1284 = vunpack.c.h.b16 %v436
      %v1285 = vunpack.c.l.b16 %v437
      %v1286 = vunpack.c.h.b16 %v437
      %v1287 = vunpack.c.l.b16 %v438
      %v1288 = vunpack.c.h.b16 %v438
      %v1289 = vunpack.c.l.b16 %v439
      %v1290 = vunpack.c.h.b16 %v439
      %v1291 = vunpack.c.l.b16 %v440
      %v1292 = vunpack.c.h.b16 %v440
      %v1293 = vunpack.c.l.b16 %v441
      %v1294 = vunpack.c.h.b16 %v441
      %v1295 = vunpack.c.l.b16 %v442
      %v1296 = vunpack.c.h.b16 %v442
      %v1297 = vunpack.c.l.b16 %v443
      %v1298 = vunpack.c.h.b16 %v443
      %v1299 = vunpack.c.l.b16 %v444
      %v1300 = vunpack.c.h.b16 %v444
      %v1301 = vunpack.c.l.b16 %v445
      %v1302 = vunpack.c.h.b16 %v445
      %v1303 = vunpack.c.l.b16 %v446
      %v1304 = vunpack.c.h.b16 %v446
      %v1305 = vunpack.c.l.b16 %v447
      %v1306 = vunpack.c.h.b16 %v447
      %v1307 = vunpack.c.l.b16 %v448
      %v1308 = vunpack.c.h.b16 %v448
      %v1309 = vunpack.c.l.b16 %v449
      %v1310 = vunpack.c.h.b16 %v449
      %v1311 = vunpack.c.l.b16 %v450
      %v1312 = vunpack.c.h.b16 %v450
      %v1313 = vunpack.c.l.b16 %v451
      %v1314 = vunpack.c.h.b16 %v451
      %v1315 = vunpack.c.l.b16 %v452
      %v1316 = vunpack.c.h.b16 %v452
      %v1317 = vunpack.c.l.b16 %v453
      %v1318 = vunpack.c.h.b16 %v453
      %v1319 = vunpack.c.l.b16 %v454
      %v1320 = vunpack.c.h.b16 %v454
      %v1321 = vunpack.c.l.b16 %v455
      %v1322 = vunpack.c.h.b16 %v455
      %v1323 = vunpack.c.l.b16 %v456
      %v1324 = vunpack.c.h.b16 %v456
      %v1325 = vunpack.c.l.b16 %v457
      %v1326 = vunpack.c.h.b16 %v457
      %v1327 = vunpack.c.l.b16 %v458
      %v1328 = vunpack.c.h.b16 %v458
      %v1329 = vunpack.c.l.b16 %v459
      %v1330 = vunpack.c.h.b16 %v459
      %v1331 = vunpack.c.l.b16 %v460
      %v1332 = vunpack.c.h.b16 %v460
      %v1333 = vunpack.c.l.b16 %v461
      %v1334 = vunpack.c.h.b16 %v461
      %v1335 = vunpack.c.l.b16 %v462
      %v1336 = vunpack.c.h.b16 %v462
      %v1337 = vunpack.c.l.b16 %v463
      %v1338 = vunpack.c.h.b16 %v463
      %v1339 = vunpack.c.l.b16 %v464
      %v1340 = vunpack.c.h.b16 %v464
      %v1341 = vunpack.c.l.b16 %v465
      %v1342 = vunpack.c.h.b16 %v465
      %v1343 = vunpack.c.l.b16 %v466
      %v1344 = vunpack.c.h.b16 %v466
      %v1345 = vunpack.c.l.b16 %v467
      %v1346 = vunpack.c.h.b16 %v467
      %v1347 = vunpack.c.l.b16 %v468
      %v1348 = vunpack.c.h.b16 %v468
      %v1349 = vunpack.c.l.b16 %v469
      %v1350 = vunpack.c.h.b16 %v469
      %v1351 = vunpack.c.l.b16 %v470
      %v1352 = vunpack.c.h.b16 %v470
      %v1353 = vunpack.c.l.b16 %v471
      %v1354 = vunpack.c.h.b16 %v471
      %v1355 = vunpack.c.l.b16 %v472
      %v1356 = vunpack.c.h.b16 %v472
      %v1357 = vunpack.c.l.b16 %v473
      %v1358 = vunpack.c.h.b16 %v473
      %v1359 = vunpack.c.l.b16 %v474
      %v1360 = vunpack.c.h.b16 %v474
      %v1361 = vunpack.c.l.b16 %v475
      %v1362 = vunpack.c.h.b16 %v475
      %v1363 = vunpack.c.l.b16 %v476
      %v1364 = vunpack.c.h.b16 %v476
      %v1365 = vunpack.c.l.b16 %v477
      %v1366 = vunpack.c.h.b16 %v477
      %v1367 = vunpack.c.l.b16 %v478
      %v1368 = vunpack.c.h.b16 %v478
      %v1369 = vunpack.c.l.b16 %v479
      %v1370 = vunpack.c.h.b16 %v479
      %v1371 = vunpack.c.l.b16 %v480
      %v1372 = vunpack.c.h.b16 %v480
      %v1373 = vunpack.c.l.b16 %v481
      %v1374 = vunpack.c.h.b16 %v481
      %v1375 = vunpack.c.l.b16 %v482
      %v1376 = vunpack.c.h.b16 %v482
      %v1377 = vunpack.c.l.b16 %v483
      %v1378 = vunpack.c.h.b16 %v483
      %v1379 = vunpack.c.l.b16 %v484
      %v1380 = vunpack.c.h.b16 %v484
      %v1381 = vunpack.c.l.b16 %v485
      %v1382 = vunpack.c.h.b16 %v485
      %v1383 = vunpack.c.l.b16 %v486
      %v1384 = vunpack.c.h.b16 %v486
      %v1385 = vunpack.c.l.b16 %v487
      %v1386 = vunpack.c.h.b16 %v487
      %v1387 = vunpack.c.l.b16 %v488
      %v1388 = vunpack.c.h.b16 %v488
      %v1389 = vunpack.c.l.b16 %v489
      %v1390 = vunpack.c.h.b16 %v489
      %v1391 = vunpack.c.l.b16 %v490
      %v1392 = vunpack.c.h.b16 %v490
      %v1393 = vunpack.c.l.b16 %v491
      %v1394 = vunpack.c.h.b16 %v491
      %v1395 = vunpack.c.l.b16 %v492
      %v1396 = vunpack.c.h.b16 %v492
      %v1397 = vunpack.c.l.b16 %v493
      %v1398 = vunpack.c.h.b16 %v493
      %v1399 = vunpack.c.l.b16 %v494
      %v1400 = vunpack.c.h.b16 %v494
      %v1401 = vunpack.c.l.b16 %v495
      %v1402 = vunpack.c.h.b16 %v495
      %v1403 = vunpack.c.l.b16 %v496
      %v1404 = vunpack.c.h.b16 %v496
      %v1405 = vunpack.c.l.b16 %v497
      %v1406 = vunpack.c.h.b16 %v497
      %v1407 = vunpack.c.l.b16 %v498
      %v1408 = vunpack.c.h.b16 %v498
      %v1409 = vunpack.c.l.b16 %v499
      %v1410 = vunpack.c.h.b16 %v499
      %v1411 = vunpack.c.l.b16 %v500
      %v1412 = vunpack.c.h.b16 %v500
      %v1413 = vunpack.c.l.b16 %v501
      %v1414 = vunpack.c.h.b16 %v501
      %v1415 = vunpack.c.l.b16 %v502
      %v1416 = vunpack.c.h.b16 %v502
      %v1417 = vunpack.c.l.b16 %v503
      %v1418 = vunpack.c.h.b16 %v503
      %v1419 = vunpack.c.l.b16 %v504
      %v1420 = vunpack.c.h.b16 %v504
      %v1421 = vunpack.c.l.b16 %v505
      %v1422 = vunpack.c.h.b16 %v505
      %v1423 = vpack.c.b16 %v853, %v847
      %v1424 = vpack.c.b16 %v854, %v848
      %v1425 = vpack.c.b16 %v855, %v849
      %v1426 = vpack.c.b16 %v856, %v850
      %v1427 = vpack.c.b16 %v857, %v851
      %v1428 = vpack.c.b16 %v858, %v852
      %v1429 = vpack.c.b16 %v865, %v859
      %v1430 = vpack.c.b16 %v866, %v860
      %v1431 = vpack.c.b16 %v867, %v861
      %v1432 = vpack.c.b16 %v868, %v862
      %v1433 = vpack.c.b16 %v869, %v863
      %v1434 = vpack.c.b16 %v870, %v864
      %v1435 = vpack.c.b16 %v877, %v871
      %v1436 = vpack.c.b16 %v878, %v872
      %v1437 = vpack.c.b16 %v879, %v873
      %v1438 = vpack.c.b16 %v880, %v874
      %v1439 = vpack.c.b16 %v881, %v875
      %v1440 = vpack.c.b16 %v882, %v876
      %v1441 = vpack.c.b16 %v889, %v883
      %v1442 = vpack.c.b16 %v890, %v884
      %v1443 = vpack.c.b16 %v891, %v885
      %v1444 = vpack.c.b16 %v892, %v886
      %v1445 = vpack.c.b16 %v893, %v887
      %v1446 = vpack.c.b16 %v894, %v888
      %v1447 = vpack.c.b16 %v901, %v895
      %v1448 = vpack.c.b16 %v902, %v896
      %v1449 = vpack.c.b16 %v903, %v897
      %v1450 = vpack.c.b16 %v904, %v898
      %v1451 = vpack.c.b16 %v905, %v899
      %v1452 = vpack.c.b16 %v906, %v900
      %v1453 = vpack.c.b16 %v913, %v907
      %v1454 = vpack.c.b16 %v914, %v908
      %v1455 = vpack.c.b16 %v915, %v909
      %v1456 = vpack.c.b16 %v916, %v910
      %v1457 = vpack.c.b16 %v917, %v911
      %v1458 = vpack.c.b16 %v918, %v912
      %v1459 = vpack.c.b16 %v925, %v919
      %v1460 = vpack.c.b16 %v926, %v920
      %v1461 = vpack.c.b16 %v927, %v921
      %v1462 = vpack.c.b16 %v928, %v922
      %v1463 = vpack.c.b16 %v929, %v923
      %v1464 = vpack.c.b16 %v930, %v924
      %v1465 = vpack.c.b16 %v937, %v931
      %v1466 = vpack.c.b16 %v938, %v932
      %v1467 = vpack.c.b16 %v939, %v933
      %v1468 = vpack.c.b16 %v940, %v934
      %v1469 = vpack.c.b16 %v941, %v935
      %v1470 = vpack.c.b16 %v942, %v936
      %v1471 = vpack.c.b16 %v949, %v943
      %v1472 = vpack.c.b16 %v950, %v944
      %v1473 = vpack.c.b16 %v951, %v945
      %v1474 = vpack.c.b16 %v952, %v946
      %v1475 = vpack.c.b16 %v953, %v947
      %v1476 = vpack.c.b16 %v954, %v948
      %v1477 = vpack.c.b16 %v961, %v955
      %v1478 = vpack.c.b16 %v962, %v956
      %v1479 = vpack.c.b16 %v963, %v957
      %v1480 = vpack.c.b16 %v964, %v958
      %v1481 = vpack.c.b16 %v965, %v959
      %v1482 = vpack.c.b16 %v966, %v960
      %v1483 = vpack.c.b16 %v973, %v967
      %v1484 = vpack.c.b16 %v974, %v968
      %v1485 = vpack.c.b16 %v975, %v969
      %v1486 = vpack.c.b16 %v976, %v970
      %v1487 = vpack.c.b16 %v977, %v971
      %v1488 = vpack.c.b16 %v978, %v972
      %v1489 = vpack.c.b16 %v985, %v979
      %v1490 = vpack.c.b16 %v986, %v980
      %v1491 = vpack.c.b16 %v987, %v981
      %v1492 = vpack.c.b16 %v988, %v982
      %v1493 = vpack.c.b16 %v989, %v983
      %v1494 = vpack.c.b16 %v990, %v984
      %v1495 = vpack.c.b16 %v997, %v991
      %v1496 = vpack.c.b16 %v998, %v992
      %v1497 = vpack.c.b16 %v999, %v993
      %v1498 = vpack.c.b16 %v1000, %v994
      %v1499 = vpack.c.b16 %v1001, %v995
      %v1500 = vpack.c.b16 %v1002, %v996
      %v1501 = vpack.c.b16 %v1009, %v1003
      %v1502 = vpack.c.b16 %v1010, %v1004
      %v1503 = vpack.c.b16 %v1011, %v1005
      %v1504 = vpack.c.b16 %v1012, %v1006
      %v1505 = vpack.c.b16 %v1013, %v1007
      %v1506 = vpack.c.b16 %v1014, %v1008
      %v1507 = vpack.c.b16 %v1021, %v1015
      %v1508 = vpack.c.b16 %v1022, %v1016
      %v1509 = vpack.c.b16 %v1023, %v1017
      %v1510 = vpack.c.b16 %v1024, %v1018
      %v1511 = vpack.c.b16 %v1025, %v1019
      %v1512 = vpack.c.b16 %v1026, %v1020
      %v1513 = vpack.c.b16 %v1033, %v1027
      %v1514 = vpack.c.b16 %v1034, %v1028
      %v1515 = vpack.c.b16 %v1035, %v1029
      %v1516 = vpack.c.b16 %v1036, %v1030
      %v1517 = vpack.c.b16 %v1037, %v1031
      %v1518 = vpack.c.b16 %v1038, %v1032
      %v1519 = vpack.c.b16 %v1045, %v1039
      %v1520 = vpack.c.b16 %v1046, %v1040
      %v1521 = vpack.c.b16 %v1047, %v1041
      %v1522 = vpack.c.b16 %v1048, %v1042
      %v1523 = vpack.c.b16 %v1049, %v1043
      %v1524 = vpack.c.b16 %v1050, %v1044
      %v1525 = vpack.c.b16 %v1057, %v1051
      %v1526 = vpack.c.b16 %v1058, %v1052
      %v1527 = vpack.c.b16 %v1059, %v1053
      %v1528 = vpack.c.b16 %v1060, %v1054
      %v1529 = vpack.c.b16 %v1061, %v1055
      %v1530 = vpack.c.b16 %v1062, %v1056
      %v1531 = vpack.c.b16 %v1069, %v1063
      %v1532 = vpack.c.b16 %v1070, %v1064
      %v1533 = vpack.c.b16 %v1071, %v1065
      %v1534 = vpack.c.b16 %v1072, %v1066
      %v1535 = vpack.c.b16 %v1073, %v1067
      %v1536 = vpack.c.b16 %v1074, %v1068
      %v1537 = vpack.c.b16 %v1081, %v1075
      %v1538 = vpack.c.b16 %v1082, %v1076
      %v1539 = vpack.c.b16 %v1083, %v1077
      %v1540 = vpack.c.b16 %v1084, %v1078
      %v1541 = vpack.c.b16 %v1085, %v1079
      %v1542 = vpack.c.b16 %v1086, %v1080
      %v1543 = vpack.c.b16 %v1093, %v1087
      %v1544 = vpack.c.b16 %v1094, %v1088
      %v1545 = vpack.c.b16 %v1095, %v1089
      %v1546 = vpack.c.b16 %v1096, %v1090
      %v1547 = vpack.c.b16 %v1097, %v1091
      %v1548 = vpack.c.b16 %v1098, %v1092
      %v1549 = vpack.c.b16 %v1105, %v1099
      %v1550 = vpack.c.b16 %v1106, %v1100
      %v1551 = vpack.c.b16 %v1107, %v1101
      %v1552 = vpack.c.b16 %v1108, %v1102
      %v1553 = vpack.c.b16 %v1109, %v1103
      %v1554 = vpack.c.b16 %v1110, %v1104
      %v1555 = vpack.c.b16 %v1117, %v1111
      %v1556 = vpack.c.b16 %v1118, %v1112
      %v1557 = vpack.c.b16 %v1119, %v1113
      %v1558 = vpack.c.b16 %v1120, %v1114
      %v1559 = vpack.c.b16 %v1121, %v1115
      %v1560 = vpack.c.b16 %v1122, %v1116
      %v1561 = vpack.c.b16 %v1129, %v1123
      %v1562 = vpack.c.b16 %v1130, %v1124
      %v1563 = vpack.c.b16 %v1131, %v1125
      %v1564 = vpack.c.b16 %v1132, %v1126
      %v1565 = vpack.c.b16 %v1133, %v1127
      %v1566 = vpack.c.b16 %v1134, %v1128
      %v1567 = vpack.c.b16 %v1141, %v1135
      %v1568 = vpack.c.b16 %v1142, %v1136
      %v1569 = vpack.c.b16 %v1143, %v1137
      %v1570 = vpack.c.b16 %v1144, %v1138
      %v1571 = vpack.c.b16 %v1145, %v1139
      %v1572 = vpack.c.b16 %v1146, %v1140
      %v1573 = vpack.c.b16 %v1153, %v1147
      %v1574 = vpack.c.b16 %v1154, %v1148
      %v1575 = vpack.c.b16 %v1155, %v1149
      %v1576 = vpack.c.b16 %v1156, %v1150
      %v1577 = vpack.c.b16 %v1157, %v1151
      %v1578 = vpack.c.b16 %v1158, %v1152
      %v1579 = vpack.c.b16 %v1165, %v1159
      %v1580 = vpack.c.b16 %v1166, %v1160
      %v1581 = vpack.c.b16 %v1167, %v1161
      %v1582 = vpack.c.b16 %v1168, %v1162
      %v1583 = vpack.c.b16 %v1169, %v1163
      %v1584 = vpack.c.b16 %v1170, %v1164
      %v1585 = vpack.c.b16 %v1177, %v1171
      %v1586 = vpack.c.b16 %v1178, %v1172
      %v1587 = vpack.c.b16 %v1179, %v1173
      %v1588 = vpack.c.b16 %v1180, %v1174
      %v1589 = vpack.c.b16 %v1181, %v1175
      %v1590 = vpack.c.b16 %v1182, %v1176
      %v1591 = vpack.c.b16 %v1189, %v1183
      %v1592 = vpack.c.b16 %v1190, %v1184
      %v1593 = vpack.c.b16 %v1191, %v1185
      %v1594 = vpack.c.b16 %v1192, %v1186
      %v1595 = vpack.c.b16 %v1193, %v1187
      %v1596 = vpack.c.b16 %v1194, %v1188
      %v1597 = vpack.c.b16 %v1201, %v1195
      %v1598 = vpack.c.b16 %v1202, %v1196
      %v1599 = vpack.c.b16 %v1203, %v1197
      %v1600 = vpack.c.b16 %v1204, %v1198
      %v1601 = vpack.c.b16 %v1205, %v1199
      %v1602 = vpack.c.b16 %v1206, %v1200
      %v1603 = vpack.c.b16 %v1213, %v1207
      %v1604 = vpack.c.b16 %v1214, %v1208
      %v1605 = vpack.c.b16 %v1215, %v1209
      %v1606 = vpack.c.b16 %v1216, %v1210
      %v1607 = vpack.c.b16 %v1217, %v1211
      %v1608 = vpack.c.b16 %v1218, %v1212
      %v1609 = vpack.c.b16 %v1225, %v1219
      %v1610 = vpack.c.b16 %v1226, %v1220
      %v1611 = vpack.c.b16 %v1227, %v1221
      %v1612 = vpack.c.b16 %v1228, %v1222
      %v1613 = vpack.c.b16 %v1229, %v1223
      %v1614 = vpack.c.b16 %v1230, %v1224
      %v1615 = vpack.c.b16 %v1237, %v1231
      %v1616 = vpack.c.b16 %v1238, %v1232
      %v1617 = vpack.c.b16 %v1239, %v1233
      %v1618 = vpack.c.b16 %v1240, %v1234
      %v1619 = vpack.c.b16 %v1241, %v1235
      %v1620 = vpack.c.b16 %v1242, %v1236
      %v1621 = vpack.c.b16 %v1249, %v1243
      %v1622 = vpack.c.b16 %v1250, %v1244
      %v1623 = vpack.c.b16 %v1251, %v1245
      %v1624 = vpack.c.b16 %v1252, %v1246
      %v1625 = vpack.c.b16 %v1253, %v1247
      %v1626 = vpack.c.b16 %v1254, %v1248
      %v1627 = vpack.c.b16 %v1261, %v1255
      %v1628 = vpack.c.b16 %v1262, %v1256
      %v1629 = vpack.c.b16 %v1263, %v1257
      %v1630 = vpack.c.b16 %v1264, %v1258
      %v1631 = vpack.c.b16 %v1265, %v1259
      %v1632 = vpack.c.b16 %v1266, %v1260
      %v1633 = vpack.c.b16 %v1273, %v1267
      %v1634 = vpack.c.b16 %v1274, %v1268
      %v1635 = vpack.c.b16 %v1275, %v1269
      %v1636 = vpack.c.b16 %v1276, %v1270
      %v1637 = vpack.c.b16 %v1277, %v1271
      %v1638 = vpack.c.b16 %v1278, %v1272
      %v1639 = vpack.c.b16 %v1285, %v1279
      %v1640 = vpack.c.b16 %v1286, %v1280
      %v1641 = vpack.c.b16 %v1287, %v1281
      %v1642 = vpack.c.b16 %v1288, %v1282
      %v1643 = vpack.c.b16 %v1289, %v1283
      %v1644 = vpack.c.b16 %v1290, %v1284
      %v1645 = vpack.c.b16 %v1297, %v1291
      %v1646 = vpack.c.b16 %v1298, %v1292
      %v1647 = vpack.c.b16 %v1299, %v1293
      %v1648 = vpack.c.b16 %v1300, %v1294
      %v1649 = vpack.c.b16 %v1301, %v1295
      %v1650 = vpack.c.b16 %v1302, %v1296
      %v1651 = vpack.c.b16 %v1309, %v1303
      %v1652 = vpack.c.b16 %v1310, %v1304
      %v1653 = vpack.c.b16 %v1311, %v1305
      %v1654 = vpack.c.b16 %v1312, %v1306
      %v1655 = vpack.c.b16 %v1313, %v1307
      %v1656 = vpack.c.b16 %v1314, %v1308
      %v1657 = vpack.c.b16 %v1321, %v1315
      %v1658 = vpack.c.b16 %v1322, %v1316
      %v1659 = vpack.c.b16 %v1323, %v1317
      %v1660 = vpack.c.b16 %v1324, %v1318
      %v1661 = vpack.c.b16 %v1325, %v1319
      %v1662 = vpack.c.b16 %v1326, %v1320
      %v1663 = vpack.c.b16 %v1333, %v1327
      %v1664 = vpack.c.b16 %v1334, %v1328
      %v1665 = vpack.c.b16 %v1335, %v1329
      %v1666 = vpack.c.b16 %v1336, %v1330
      %v1667 = vpack.c.b16 %v1337, %v1331
      %v1668 = vpack.c.b16 %v1338, %v1332
      %v1669 = vpack.c.b16 %v1345, %v1339
      %v1670 = vpack.c.b16 %v1346, %v1340
      %v1671 = vpack.c.b16 %v1347, %v1341
      %v1672 = vpack.c.b16 %v1348, %v1342
      %v1673 = vpack.c.b16 %v1349, %v1343
      %v1674 = vpack.c.b16 %v1350, %v1344
      %v1675 = vpack.c.b16 %v1357, %v1351
      %v1676 = vpack.c.b16 %v1358, %v1352
      %v1677 = vpack.c.b16 %v1359, %v1353
      %v1678 = vpack.c.b16 %v1360, %v1354
      %v1679 = vpack.c.b16 %v1361, %v1355
      %v1680 = vpack.c.b16 %v1362, %v1356
      %v1681 = vpack.c.b16 %v1369, %v1363
      %v1682 = vpack.c.b16 %v1370, %v1364
      %v1683 = vpack.c.b16 %v1371, %v1365
      %v1684 = vpack.c.b16 %v1372, %v1366
      %v1685 = vpack.c.b16 %v1373, %v1367
      %v1686 = vpack.c.b16 %v1374, %v1368
      %v1687 = vpack.c.b16 %v1381, %v1375
      %v1688 = vpack.c.b16 %v1382, %v1376
      %v1689 = vpack.c.b16 %v1383, %v1377
      %v1690 = vpack.c.b16 %v1384, %v1378
      %v1691 = vpack.c.b16 %v1385, %v1379
      %v1692 = vpack.c.b16 %v1386, %v1380
      %v1693 = vpack.c.b16 %v1393, %v1387
      %v1694 = vpack.c.b16 %v1394, %v1388
      %v1695 = vpack.c.b16 %v1395, %v1389
      %v1696 = vpack.c.b16 %v1396, %v1390
      %v1697 = vpack.c.b16 %v1397, %v1391
      %v1698 = vpack.c.b16 %v1398, %v1392
      %v1699 = vpack.c.b16 %v1405, %v1399
      %v1700 = vpack.c.b16 %v1406, %v1400
      %v1701 = vpack.c.b16 %v1407, %v1401
      %v1702 = vpack.c.b16 %v1408, %v1402
      %v1703 = vpack.c.b16 %v1409, %v1403
      %v1704 = vpack.c.b16 %v1410, %v1404
      %v1705 = vpack.c.b16 %v1417, %v1411
      %v1706 = vpack.c.b16 %v1418, %v1412
      %v1707 = vpack.c.b16 %v1419, %v1413
      %v1708 = vpack.c.b16 %v1420, %v1414
      %v1709 = vpack.c.b16 %v1421, %v1415
      %v1710 = vpack.c.b16 %v1422, %v1416
      %1999 = vmatprep.subr.bf16.mxu0 %v1424
      %2000 = vmatpush1.bf16.msra.mxu0 %v1423
      %2001 = vmatprep.subr.bf16.mxu0 %v1430
      %2002 = vmatpush1.bf16.msra.mxu0 %v1429
      %2003 = vmatprep.subr.bf16.mxu0 %v1436
      %2004 = vmatpush1.bf16.msra.mxu0 %v1435
      %2005 = vmatprep.subr.bf16.mxu0 %v1442
      %2006 = vmatpush1.bf16.msra.mxu0 %v1441
      %2007 = vmatprep.subr.bf16.mxu0 %v1448
      %2008 = vmatpush1.bf16.msra.mxu0 %v1447
      %2009 = vmatprep.subr.bf16.mxu0 %v1454
      %2010 = vmatpush1.bf16.msra.mxu0 %v1453
      %2011 = vmatprep.subr.bf16.mxu0 %v1460
      %2012 = vmatpush1.bf16.msra.mxu0 %v1459
      %2013 = vmatprep.subr.bf16.mxu0 %v1466
      %2014 = vmatpush1.bf16.msra.mxu0 %v1465
      %2015 = vmatprep.subr.bf16.mxu0 %v1472
      %2016 = vmatpush1.bf16.msra.mxu0 %v1471
      %2017 = vmatprep.subr.bf16.mxu0 %v1478
      %2018 = vmatpush1.bf16.msra.mxu0 %v1477
      %2019 = vmatprep.subr.bf16.mxu0 %v1484
      %2020 = vmatpush1.bf16.msra.mxu0 %v1483
      %2021 = vmatprep.subr.bf16.mxu0 %v1490
      %2022 = vmatpush1.bf16.msra.mxu0 %v1489
      %2023 = vmatprep.subr.bf16.mxu0 %v1496
      %2024 = vmatpush1.bf16.msra.mxu0 %v1495
      %2025 = vmatprep.subr.bf16.mxu0 %v1502
      %2026 = vmatpush1.bf16.msra.mxu0 %v1501
      %2027 = vmatprep.subr.bf16.mxu0 %v1508
      %2028 = vmatpush1.bf16.msra.mxu0 %v1507
      %2029 = vmatprep.subr.bf16.mxu0 %v1514
      %2030 = vmatpush1.bf16.msra.mxu0 %v1513
      %2031 = vmatprep.mubr.bf16.mxu0 %v548
      %2032 = vmatmul.mubr.bf16.gmra.mrb[0].mxu0 %v547
      %v2033 = vpop.f32.mrb[0].mxu0
      %v2034 = vadd.f32 %v511, %v2033
      %v2035 = vpop.f32.mrb[0].mxu0
      %v2036 = vadd.f32 %v515, %v2035
      %v2037 = vpop.f32.mrb[0].mxu0
      %v2038 = vpop.f32.mrb[0].mxu0
      %2039 = vdwg.mxu0
      %2040 = vmatprep.subr.bf16.mxu0 %v1520
      %2041 = vmatpush1.bf16.msra.mxu0 %v1519
      %2042 = vmatprep.subr.bf16.mxu0 %v1526
      %2043 = vmatpush1.bf16.msra.mxu0 %v1525
      %2044 = vmatprep.subr.bf16.mxu0 %v1532
      %2045 = vmatpush1.bf16.msra.mxu0 %v1531
      %2046 = vmatprep.subr.bf16.mxu0 %v1538
      %2047 = vmatpush1.bf16.msra.mxu0 %v1537
      %2048 = vmatprep.subr.bf16.mxu0 %v1544
      %2049 = vmatpush1.bf16.msra.mxu0 %v1543
      %2050 = vmatprep.subr.bf16.mxu0 %v1550
      %2051 = vmatpush1.bf16.msra.mxu0 %v1549
      %2052 = vmatprep.subr.bf16.mxu0 %v1556
      %2053 = vmatpush1.bf16.msra.mxu0 %v1555
      %2054 = vmatprep.subr.bf16.mxu0 %v1562
      %2055 = vmatpush1.bf16.msra.mxu0 %v1561
      %2056 = vmatprep.subr.bf16.mxu0 %v1568
      %2057 = vmatpush1.bf16.msra.mxu0 %v1567
      %2058 = vmatprep.subr.bf16.mxu0 %v1574
      %2059 = vmatpush1.bf16.msra.mxu0 %v1573
      %2060 = vmatprep.subr.bf16.mxu0 %v1580
      %2061 = vmatpush1.bf16.msra.mxu0 %v1579
      %2062 = vmatprep.subr.bf16.mxu0 %v1586
      %2063 = vmatpush1.bf16.msra.mxu0 %v1585
      %2064 = vmatprep.subr.bf16.mxu0 %v1592
      %2065 = vmatpush1.bf16.msra.mxu0 %v1591
      %2066 = vmatprep.subr.bf16.mxu0 %v1598
      %2067 = vmatpush1.bf16.msra.mxu0 %v1597
      %2068 = vmatprep.subr.bf16.mxu0 %v1604
      %2069 = vmatpush1.bf16.msra.mxu0 %v1603
      %2070 = vmatprep.subr.bf16.mxu0 %v1610
      %2071 = vmatpush1.bf16.msra.mxu0 %v1609
      %2072 = vmatprep.mubr.bf16.mxu0 %v550
      %2073 = vmatmul.mubr.bf16.gmra.mrb[0].mxu0 %v549
      %v2074 = vpop.f32.mrb[0].mxu0
      %v2075 = vadd.f32 %v2034, %v2074
      %v2076 = vpop.f32.mrb[0].mxu0
      %v2077 = vadd.f32 %v2036, %v2076
      %v2078 = vpop.f32.mrb[0].mxu0
      %v2079 = vpop.f32.mrb[0].mxu0
      %2080 = vdwg.mxu0
      %2081 = vmatprep.subr.bf16.mxu0 %v1616
      %2082 = vmatpush1.bf16.msra.mxu0 %v1615
      %2083 = vmatprep.subr.bf16.mxu0 %v1622
      %2084 = vmatpush1.bf16.msra.mxu0 %v1621
      %2085 = vmatprep.subr.bf16.mxu0 %v1628
      %2086 = vmatpush1.bf16.msra.mxu0 %v1627
      %2087 = vmatprep.subr.bf16.mxu0 %v1634
      %2088 = vmatpush1.bf16.msra.mxu0 %v1633
      %2089 = vmatprep.subr.bf16.mxu0 %v1640
      %2090 = vmatpush1.bf16.msra.mxu0 %v1639
      %2091 = vmatprep.subr.bf16.mxu0 %v1646
      %2092 = vmatpush1.bf16.msra.mxu0 %v1645
      %2093 = vmatprep.subr.bf16.mxu0 %v1652
      %2094 = vmatpush1.bf16.msra.mxu0 %v1651
      %2095 = vmatprep.subr.bf16.mxu0 %v1658
      %2096 = vmatpush1.bf16.msra.mxu0 %v1657
      %2097 = vmatprep.subr.bf16.mxu0 %v1664
      %2098 = vmatpush1.bf16.msra.mxu0 %v1663
      %2099 = vmatprep.subr.bf16.mxu0 %v1670
      %2100 = vmatpush1.bf16.msra.mxu0 %v1669
      %2101 = vmatprep.subr.bf16.mxu0 %v1676
      %2102 = vmatpush1.bf16.msra.mxu0 %v1675
      %2103 = vmatprep.subr.bf16.mxu0 %v1682
      %2104 = vmatpush1.bf16.msra.mxu0 %v1681
      %2105 = vmatprep.subr.bf16.mxu0 %v1688
      %2106 = vmatpush1.bf16.msra.mxu0 %v1687
      %2107 = vmatprep.subr.bf16.mxu0 %v1694
      %2108 = vmatpush1.bf16.msra.mxu0 %v1693
      %2109 = vmatprep.subr.bf16.mxu0 %v1700
      %2110 = vmatpush1.bf16.msra.mxu0 %v1699
      %2111 = vmatprep.subr.bf16.mxu0 %v1706
      %2112 = vmatpush1.bf16.msra.mxu0 %v1705
      %2113 = vmatprep.mubr.bf16.mxu0 %v552
      %2114 = vmatmul.mubr.bf16.gmra.mrb[0].mxu0 %v551
      %v2115 = vpop.f32.mrb[0].mxu0
      %v2116 = vadd.f32 %v2075, %v2115
      %v2117 = vpop.f32.mrb[0].mxu0
      %v2118 = vadd.f32 %v2077, %v2117
      %v2119 = vpop.f32.mrb[0].mxu0
      %v2120 = vpop.f32.mrb[0].mxu0
      %2121 = vdwg.mxu0
      %2122 = vmatprep.subr.bf16.mxu0 %v1426
      %2123 = vmatpush1.bf16.msra.mxu0 %v1425
      %2124 = vmatprep.subr.bf16.mxu0 %v1432
      %2125 = vmatpush1.bf16.msra.mxu0 %v1431
      %2126 = vmatprep.subr.bf16.mxu0 %v1438
      %2127 = vmatpush1.bf16.msra.mxu0 %v1437
      %2128 = vmatprep.subr.bf16.mxu0 %v1444
      %2129 = vmatpush1.bf16.msra.mxu0 %v1443
      %2130 = vmatprep.subr.bf16.mxu0 %v1450
      %2131 = vmatpush1.bf16.msra.mxu0 %v1449
      %2132 = vmatprep.subr.bf16.mxu0 %v1456
      %2133 = vmatpush1.bf16.msra.mxu0 %v1455
      %2134 = vmatprep.subr.bf16.mxu0 %v1462
      %2135 = vmatpush1.bf16.msra.mxu0 %v1461
      %2136 = vmatprep.subr.bf16.mxu0 %v1468
      %2137 = vmatpush1.bf16.msra.mxu0 %v1467
      %2138 = vmatprep.subr.bf16.mxu0 %v1474
      %2139 = vmatpush1.bf16.msra.mxu0 %v1473
      %2140 = vmatprep.subr.bf16.mxu0 %v1480
      %2141 = vmatpush1.bf16.msra.mxu0 %v1479
      %2142 = vmatprep.subr.bf16.mxu0 %v1486
      %2143 = vmatpush1.bf16.msra.mxu0 %v1485
      %2144 = vmatprep.subr.bf16.mxu0 %v1492
      %2145 = vmatpush1.bf16.msra.mxu0 %v1491
      %2146 = vmatprep.subr.bf16.mxu0 %v1498
      %2147 = vmatpush1.bf16.msra.mxu0 %v1497
      %2148 = vmatprep.subr.bf16.mxu0 %v1504
      %2149 = vmatpush1.bf16.msra.mxu0 %v1503
      %2150 = vmatprep.subr.bf16.mxu0 %v1510
      %2151 = vmatpush1.bf16.msra.mxu0 %v1509
      %2152 = vmatprep.subr.bf16.mxu0 %v1516
      %2153 = vmatpush1.bf16.msra.mxu0 %v1515
      %2154 = vmatprep.mubr.bf16.mxu0 %v548
      %2155 = vmatmul.mubr.bf16.gmra.mrb[0].mxu0 %v547
      %v2156 = vpop.f32.mrb[0].mxu0
      %v2157 = vadd.f32 %v519, %v2156
      %v2158 = vpop.f32.mrb[0].mxu0
      %v2159 = vadd.f32 %v523, %v2158
      %v2160 = vpop.f32.mrb[0].mxu0
      %v2161 = vpop.f32.mrb[0].mxu0
      %2162 = vdwg.mxu0
      %2163 = vmatprep.subr.bf16.mxu0 %v1522
      %2164 = vmatpush1.bf16.msra.mxu0 %v1521
      %2165 = vmatprep.subr.bf16.mxu0 %v1528
      %2166 = vmatpush1.bf16.msra.mxu0 %v1527
      %2167 = vmatprep.subr.bf16.mxu0 %v1534
      %2168 = vmatpush1.bf16.msra.mxu0 %v1533
      %2169 = vmatprep.subr.bf16.mxu0 %v1540
      %2170 = vmatpush1.bf16.msra.mxu0 %v1539
      %2171 = vmatprep.subr.bf16.mxu0 %v1546
      %2172 = vmatpush1.bf16.msra.mxu0 %v1545
      %2173 = vmatprep.subr.bf16.mxu0 %v1552
      %2174 = vmatpush1.bf16.msra.mxu0 %v1551
      %2175 = vmatprep.subr.bf16.mxu0 %v1558
      %2176 = vmatpush1.bf16.msra.mxu0 %v1557
      %2177 = vmatprep.subr.bf16.mxu0 %v1564
      %2178 = vmatpush1.bf16.msra.mxu0 %v1563
      %2179 = vmatprep.subr.bf16.mxu0 %v1570
      %2180 = vmatpush1.bf16.msra.mxu0 %v1569
      %2181 = vmatprep.subr.bf16.mxu0 %v1576
      %2182 = vmatpush1.bf16.msra.mxu0 %v1575
      %2183 = vmatprep.subr.bf16.mxu0 %v1582
      %2184 = vmatpush1.bf16.msra.mxu0 %v1581
      %2185 = vmatprep.subr.bf16.mxu0 %v1588
      %2186 = vmatpush1.bf16.msra.mxu0 %v1587
      %2187 = vmatprep.subr.bf16.mxu0 %v1594
      %2188 = vmatpush1.bf16.msra.mxu0 %v1593
      %2189 = vmatprep.subr.bf16.mxu0 %v1600
      %2190 = vmatpush1.bf16.msra.mxu0 %v1599
      %2191 = vmatprep.subr.bf16.mxu0 %v1606
      %2192 = vmatpush1.bf16.msra.mxu0 %v1605
      %2193 = vmatprep.subr.bf16.mxu0 %v1612
      %2194 = vmatpush1.bf16.msra.mxu0 %v1611
      %2195 = vmatprep.mubr.bf16.mxu0 %v550
      %2196 = vmatmul.mubr.bf16.gmra.mrb[0].mxu0 %v549
      %v2197 = vpop.f32.mrb[0].mxu0
      %v2198 = vadd.f32 %v2157, %v2197
      %v2199 = vpop.f32.mrb[0].mxu0
      %v2200 = vadd.f32 %v2159, %v2199
      %v2201 = vpop.f32.mrb[0].mxu0
      %v2202 = vpop.f32.mrb[0].mxu0
      %2203 = vdwg.mxu0
      %2204 = vmatprep.subr.bf16.mxu0 %v1618
      %2205 = vmatpush1.bf16.msra.mxu0 %v1617
      %2206 = vmatprep.subr.bf16.mxu0 %v1624
      %2207 = vmatpush1.bf16.msra.mxu0 %v1623
      %2208 = vmatprep.subr.bf16.mxu0 %v1630
      %2209 = vmatpush1.bf16.msra.mxu0 %v1629
      %2210 = vmatprep.subr.bf16.mxu0 %v1636
      %2211 = vmatpush1.bf16.msra.mxu0 %v1635
      %2212 = vmatprep.subr.bf16.mxu0 %v1642
      %2213 = vmatpush1.bf16.msra.mxu0 %v1641
      %2214 = vmatprep.subr.bf16.mxu0 %v1648
      %2215 = vmatpush1.bf16.msra.mxu0 %v1647
      %2216 = vmatprep.subr.bf16.mxu0 %v1654
      %2217 = vmatpush1.bf16.msra.mxu0 %v1653
      %2218 = vmatprep.subr.bf16.mxu0 %v1660
      %2219 = vmatpush1.bf16.msra.mxu0 %v1659
      %2220 = vmatprep.subr.bf16.mxu0 %v1666
      %2221 = vmatpush1.bf16.msra.mxu0 %v1665
      %2222 = vmatprep.subr.bf16.mxu0 %v1672
      %2223 = vmatpush1.bf16.msra.mxu0 %v1671
      %2224 = vmatprep.subr.bf16.mxu0 %v1678
      %2225 = vmatpush1.bf16.msra.mxu0 %v1677
      %2226 = vmatprep.subr.bf16.mxu0 %v1684
      %2227 = vmatpush1.bf16.msra.mxu0 %v1683
      %2228 = vmatprep.subr.bf16.mxu0 %v1690
      %2229 = vmatpush1.bf16.msra.mxu0 %v1689
      %2230 = vmatprep.subr.bf16.mxu0 %v1696
      %2231 = vmatpush1.bf16.msra.mxu0 %v1695
      %2232 = vmatprep.subr.bf16.mxu0 %v1702
      %2233 = vmatpush1.bf16.msra.mxu0 %v1701
      %2234 = vmatprep.subr.bf16.mxu0 %v1708
      %2235 = vmatpush1.bf16.msra.mxu0 %v1707
      %2236 = vmatprep.mubr.bf16.mxu0 %v552
      %2237 = vmatmul.mubr.bf16.gmra.mrb[0].mxu0 %v551
      %v2238 = vpop.f32.mrb[0].mxu0
      %v2239 = vadd.f32 %v2198, %v2238
      %v2240 = vpop.f32.mrb[0].mxu0
      %v2241 = vadd.f32 %v2200, %v2240
      %v2242 = vpop.f32.mrb[0].mxu0
      %v2243 = vpop.f32.mrb[0].mxu0
      %2244 = vdwg.mxu0
      %2245 = vmatprep.subr.bf16.mxu0 %v1428
      %2246 = vmatpush1.bf16.msra.mxu0 %v1427
      %2247 = vmatprep.subr.bf16.mxu0 %v1434
      %2248 = vmatpush1.bf16.msra.mxu0 %v1433
      %2249 = vmatprep.subr.bf16.mxu0 %v1440
      %2250 = vmatpush1.bf16.msra.mxu0 %v1439
      %2251 = vmatprep.subr.bf16.mxu0 %v1446
      %2252 = vmatpush1.bf16.msra.mxu0 %v1445
      %2253 = vmatprep.subr.bf16.mxu0 %v1452
      %2254 = vmatpush1.bf16.msra.mxu0 %v1451
      %2255 = vmatprep.subr.bf16.mxu0 %v1458
      %2256 = vmatpush1.bf16.msra.mxu0 %v1457
      %2257 = vmatprep.subr.bf16.mxu0 %v1464
      %2258 = vmatpush1.bf16.msra.mxu0 %v1463
      %2259 = vmatprep.subr.bf16.mxu0 %v1470
      %2260 = vmatpush1.bf16.msra.mxu0 %v1469
      %2261 = vmatprep.subr.bf16.mxu0 %v1476
      %2262 = vmatpush1.bf16.msra.mxu0 %v1475
      %2263 = vmatprep.subr.bf16.mxu0 %v1482
      %2264 = vmatpush1.bf16.msra.mxu0 %v1481
      %2265 = vmatprep.subr.bf16.mxu0 %v1488
      %2266 = vmatpush1.bf16.msra.mxu0 %v1487
      %2267 = vmatprep.subr.bf16.mxu0 %v1494
      %2268 = vmatpush1.bf16.msra.mxu0 %v1493
      %2269 = vmatprep.subr.bf16.mxu0 %v1500
      %2270 = vmatpush1.bf16.msra.mxu0 %v1499
      %2271 = vmatprep.subr.bf16.mxu0 %v1506
      %2272 = vmatpush1.bf16.msra.mxu0 %v1505
      %2273 = vmatprep.subr.bf16.mxu0 %v1512
      %2274 = vmatpush1.bf16.msra.mxu0 %v1511
      %2275 = vmatprep.subr.bf16.mxu0 %v1518
      %2276 = vmatpush1.bf16.msra.mxu0 %v1517
      %2277 = vmatprep.mubr.bf16.mxu0 %v548
      %2278 = vmatmul.mubr.bf16.gmra.mrb[0].mxu0 %v547
      %v2279 = vpop.f32.mrb[0].mxu0
      %v2280 = vadd.f32 %v527, %v2279
      %v2281 = vpop.f32.mrb[0].mxu0
      %v2282 = vadd.f32 %v531, %v2281
      %v2283 = vpop.f32.mrb[0].mxu0
      %v2284 = vpop.f32.mrb[0].mxu0
      %2285 = vdwg.mxu0
      %2286 = vmatprep.subr.bf16.mxu0 %v1524
      %2287 = vmatpush1.bf16.msra.mxu0 %v1523
      %2288 = vmatprep.subr.bf16.mxu0 %v1530
      %2289 = vmatpush1.bf16.msra.mxu0 %v1529
      %2290 = vmatprep.subr.bf16.mxu0 %v1536
      %2291 = vmatpush1.bf16.msra.mxu0 %v1535
      %2292 = vmatprep.subr.bf16.mxu0 %v1542
      %2293 = vmatpush1.bf16.msra.mxu0 %v1541
      %2294 = vmatprep.subr.bf16.mxu0 %v1548
      %2295 = vmatpush1.bf16.msra.mxu0 %v1547
      %2296 = vmatprep.subr.bf16.mxu0 %v1554
      %2297 = vmatpush1.bf16.msra.mxu0 %v1553
      %2298 = vmatprep.subr.bf16.mxu0 %v1560
      %2299 = vmatpush1.bf16.msra.mxu0 %v1559
      %2300 = vmatprep.subr.bf16.mxu0 %v1566
      %2301 = vmatpush1.bf16.msra.mxu0 %v1565
      %2302 = vmatprep.subr.bf16.mxu0 %v1572
      %2303 = vmatpush1.bf16.msra.mxu0 %v1571
      %2304 = vmatprep.subr.bf16.mxu0 %v1578
      %2305 = vmatpush1.bf16.msra.mxu0 %v1577
      %2306 = vmatprep.subr.bf16.mxu0 %v1584
      %2307 = vmatpush1.bf16.msra.mxu0 %v1583
      %2308 = vmatprep.subr.bf16.mxu0 %v1590
      %2309 = vmatpush1.bf16.msra.mxu0 %v1589
      %2310 = vmatprep.subr.bf16.mxu0 %v1596
      %2311 = vmatpush1.bf16.msra.mxu0 %v1595
      %2312 = vmatprep.subr.bf16.mxu0 %v1602
      %2313 = vmatpush1.bf16.msra.mxu0 %v1601
      %2314 = vmatprep.subr.bf16.mxu0 %v1608
      %2315 = vmatpush1.bf16.msra.mxu0 %v1607
      %2316 = vmatprep.subr.bf16.mxu0 %v1614
      %2317 = vmatpush1.bf16.msra.mxu0 %v1613
      %2318 = vmatprep.mubr.bf16.mxu0 %v550
      %2319 = vmatmul.mubr.bf16.gmra.mrb[0].mxu0 %v549
      %v2320 = vpop.f32.mrb[0].mxu0
      %v2321 = vadd.f32 %v2280, %v2320
      %v2322 = vpop.f32.mrb[0].mxu0
      %v2323 = vadd.f32 %v2282, %v2322
      %v2324 = vpop.f32.mrb[0].mxu0
      %v2325 = vpop.f32.mrb[0].mxu0
      %2326 = vdwg.mxu0
      %2327 = vmatprep.subr.bf16.mxu0 %v1620
      %2328 = vmatpush1.bf16.msra.mxu0 %v1619
      %2329 = vmatprep.subr.bf16.mxu0 %v1626
      %2330 = vmatpush1.bf16.msra.mxu0 %v1625
      %2331 = vmatprep.subr.bf16.mxu0 %v1632
      %2332 = vmatpush1.bf16.msra.mxu0 %v1631
      %2333 = vmatprep.subr.bf16.mxu0 %v1638
      %2334 = vmatpush1.bf16.msra.mxu0 %v1637
      %2335 = vmatprep.subr.bf16.mxu0 %v1644
      %2336 = vmatpush1.bf16.msra.mxu0 %v1643
      %2337 = vmatprep.subr.bf16.mxu0 %v1650
      %2338 = vmatpush1.bf16.msra.mxu0 %v1649
      %2339 = vmatprep.subr.bf16.mxu0 %v1656
      %2340 = vmatpush1.bf16.msra.mxu0 %v1655
      %2341 = vmatprep.subr.bf16.mxu0 %v1662
      %2342 = vmatpush1.bf16.msra.mxu0 %v1661
      %2343 = vmatprep.subr.bf16.mxu0 %v1668
      %2344 = vmatpush1.bf16.msra.mxu0 %v1667
      %2345 = vmatprep.subr.bf16.mxu0 %v1674
      %2346 = vmatpush1.bf16.msra.mxu0 %v1673
      %2347 = vmatprep.subr.bf16.mxu0 %v1680
      %2348 = vmatpush1.bf16.msra.mxu0 %v1679
      %2349 = vmatprep.subr.bf16.mxu0 %v1686
      %2350 = vmatpush1.bf16.msra.mxu0 %v1685
      %2351 = vmatprep.subr.bf16.mxu0 %v1692
      %2352 = vmatpush1.bf16.msra.mxu0 %v1691
      %2353 = vmatprep.subr.bf16.mxu0 %v1698
      %2354 = vmatpush1.bf16.msra.mxu0 %v1697
      %2355 = vmatprep.subr.bf16.mxu0 %v1704
      %2356 = vmatpush1.bf16.msra.mxu0 %v1703
      %2357 = vmatprep.subr.bf16.mxu0 %v1710
      %2358 = vmatpush1.bf16.msra.mxu0 %v1709
      %2359 = vmatprep.mubr.bf16.mxu0 %v552
      %2360 = vmatmul.mubr.bf16.gmra.mrb[0].mxu0 %v551
      %v2361 = vpop.f32.mrb[0].mxu0
      %v2362 = vadd.f32 %v2321, %v2361
      %v2363 = vpop.f32.mrb[0].mxu0
      %v2364 = vadd.f32 %v2323, %v2363
      %v2365 = vpop.f32.mrb[0].mxu0
      %v2366 = vpop.f32.mrb[0].mxu0
      %2367 = vdwg.mxu0
      %v2368 = vtanh.pop %v2116
      %v2369 = vtanh.pop %v2118
      %v2370 = vtanh.pop %v2239
      %v2371 = vtanh.pop %v2241
      %v2372 = vtanh.pop %v2362
      %v2373 = vtanh.pop %v2364
      %v2374 = vld [vmem:[%s209] sm:$0xff]
      %2376 = vset.pattern.permute.xlu0 0
      %2377 = vperm.xlu0 %2376, %v2374
      %v2378 = vpop.permute.xlu0 %2377
      %v2380 = vmul.f32 %v2368, %v2378
      %v2381 = vmul.f32 %v2369, %v2378
      %v2382 = vmul.f32 %v2370, %v2378
      %v2383 = vmul.f32 %v2371, %v2378
      %v2384 = vmul.f32 %v2372, %v2378
      %v2385 = vmul.f32 %v2373, %v2378
      %2386 = vst [vmem:[%s214] sm:$0xff] %v2380
      %2387 = vst [vmem:[%s214 + $0x8] sm:$0xff] %v2381
      %2388 = vst [vmem:[%s214 + $0x10] sm:$0xff] %v2382
      %2389 = vst [vmem:[%s214 + $0x18] sm:$0xff] %v2383
      %2390 = vst [vmem:[%s214 + $0x20] sm:$0xff] %v2384
      %2391 = vst [vmem:[%s214 + $0x28] sm:$0xff] %v2385
      %p2392 = scmp.lt.s32.totalorder %s15, 1
      %s2393 = scalar_select %p2392, %s15, 1
      %s2394 = smul.addr %s2393, 6
      %s2395 = smul.addr %s2394, 8
      %s2396 = scalar_lea.vmem %s4, %s2395
      // Predicated region
      $region37: #{cross_encode_classifier.2} parent=35 // pred_check
        %p2397 = pneg %p127
      $region38: #{cross_encode_classifier.2} parent=35 // pred_check_branch
        %2399 = sbr.rel (%p2397) target = $region40
      $region39: #{cross_encode_classifier.2} parent=35 // pred_region
        _
      $region40: #{cross_encode_classifier.2} parent=35 // pred_fallthru
        _
    $region36: #{cross_encode_classifier.2} parent=5 // pred_fallthru
      _
    %p2400 = scmp.le.s32.totalorder 2, %s10
    // Predicated region
    $region41: #{cross_encode_classifier.2} parent=5 // pred_check
      %p2401 = pneg %p2400
    $region42: #{cross_encode_classifier.2} parent=5 // pred_check_branch
      %2403 = sbr.rel (%p2401) target = $region44
    $region43: #{cross_encode_classifier.2} parent=5 // pred_region
      %s2404 = ssub.s32 %s10, 2
      // Predicated region
      $region45: #{cross_encode_classifier.2} parent=43 // pred_check
        %p2405 = pneg %p133
      $region46: #{cross_encode_classifier.2} parent=43 // pred_check_branch
        %2407 = sbr.rel (%p2405) target = $region48
      $region47: #{cross_encode_classifier.2} parent=43 // pred_region
        %p2408 = scmp.lt.s32.totalorder %s16, 1
        %s2409 = scalar_select %p2408, %s16, 1
        %s2410 = smul.addr %s2409, 6
        %s2411 = smul.addr %s2410, 8
        %s2412 = scalar_lea.vmem %s4, %s2411
      $region48: #{cross_encode_classifier.2} parent=43 // pred_fallthru
        _
    $region44: #{cross_encode_classifier.2} parent=5 // pred_fallthru
      _
  $region6: #{cross_encode_classifier.2} parent=0 // loop_footer
    %s14 = sadd.s32 1, %s10
  $region7: #{cross_encode_classifier.2} parent=0 // loop_footer_branch
    %9 = sbr.rel target = $region3
  $region8: #{cross_encode_classifier.2} parent=0 // loop_exit
    _

</llo_original>
